<compile_context>
chip_gen: v7x
topology: tpu7x:2x2x1
jax: 0.10.0
libtpu: 0.0.40
codegen_flags: <defaults>
</compile_context>

<pallas_src>
import functools
import math

import jax
import jax.numpy as jnp
from jax.experimental import pallas as pl
from jax.experimental.pallas import tpu as pltpu

LANE = 128
KPAD1 = 128      # conv1: K = 3*5*5 = 75  -> 128
KPAD2 = 256      # conv2: K = 6*5*5 = 150 -> 256
KPAD_FC1 = 512   # fc1:   K = 400         -> 512


def _round_up(x, m):
    return (x + m - 1) // m * m


# ----------------------------- Pallas kernels -----------------------------

def _conv_relu_pool_kernel(x_ref, w_ref, b_ref, o_ref, *, kpad):
    """Fused im2col-conv + bias + ReLU + 2x2 max-pool.

    x_ref : (TM, 4*kpad) bf16 -- one row per *pooled* output pixel; the 4 pool
            candidates' im2col features (zero padded to kpad) are concatenated
            along the lane axis (128-aligned static slices).
    w_ref : (kpad, 128) bf16  -- packed conv weights (rows ordered (di,dj,cin)).
    b_ref : (1, 128) f32      -- bias, zero padded.
    o_ref : (TM, 128)         -- pooled activation, lane dense.
    """
    w = w_ref[...]
    m = jnp.dot(x_ref[:, 0:kpad], w, preferred_element_type=jnp.float32)
    for s in range(1, 4):
        a = jnp.dot(x_ref[:, s * kpad:(s + 1) * kpad], w,
                    preferred_element_type=jnp.float32)
        m = jnp.maximum(m, a)
    # relu(max_s(conv_s) + b) == maxpool(relu(conv + b)) since the bias is
    # constant over the pool window and relu is monotone.
    o_ref[...] = jnp.maximum(m + b_ref[...], 0.0).astype(o_ref.dtype)


def _fc_fused_kernel(x_ref, w1_ref, b1_ref, w2_ref, b2_ref, w3_ref, b3_ref,
                     o_ref):
    """fc1+ReLU -> fc2+ReLU -> fc3 fused; intermediates stay on-chip."""
    h = jnp.dot(x_ref[...], w1_ref[...], preferred_element_type=jnp.float32)
    h = jnp.maximum(h + b1_ref[...], 0.0)
    h = jnp.dot(h.astype(w2_ref.dtype), w2_ref[...],
                preferred_element_type=jnp.float32)
    h = jnp.maximum(h + b2_ref[...], 0.0)
    h = jnp.dot(h.astype(w3_ref.dtype), w3_ref[...],
                preferred_element_type=jnp.float32)
    o_ref[...] = (h + b3_ref[...]).astype(o_ref.dtype)


# ----------------------------- wrappers ------------------------------------

def conv_relu_pool(cols, w, b, *, out_dtype=jnp.bfloat16):
    """cols:(M, 4*Kpad) bf16, w:(Kpad,128) bf16, b:(1,128) f32 -> (M,128)."""
    M, K4 = cols.shape
    kpad = K4 // 4
    tm = min(256, _round_up(M, 8))
    mpad = _round_up(M, tm)
    if mpad != M:
        cols = jnp.pad(cols, ((0, mpad - M), (0, 0)))
    flops = 2 * mpad * K4 * LANE
    bytes_accessed = (mpad * K4 * 2 + w.size * 2 + b.size * 4
                      + mpad * LANE * jnp.dtype(out_dtype).itemsize)
    out = pl.pallas_call(
        functools.partial(_conv_relu_pool_kernel, kpad=kpad),
        out_shape=jax.ShapeDtypeStruct((mpad, LANE), out_dtype),
        grid=(mpad // tm,),
        in_specs=[
            pl.BlockSpec((tm, K4), lambda i: (i, 0)),
            pl.BlockSpec((kpad, LANE), lambda i: (0, 0)),
            pl.BlockSpec((1, LANE), lambda i: (0, 0)),
        ],
        out_specs=pl.BlockSpec((tm, LANE), lambda i: (i, 0)),
        compiler_params=pltpu.CompilerParams(
            dimension_semantics=("parallel",)),
        cost_estimate=pl.CostEstimate(flops=flops, transcendentals=0,
                                      bytes_accessed=bytes_accessed),
    )(cols, w, b)
    return out[:M]


def fc_fused(x, w1, b1, w2, b2, w3, b3):
    """x:(M,512) bf16 -> logits (M,128) f32 (valid cols 0..9)."""
    M, K = x.shape
    tm = min(256, _round_up(M, 8))
    mpad = _round_up(M, tm)
    if mpad != M:
        x = jnp.pad(x, ((0, mpad - M), (0, 0)))
    flops = 2 * mpad * (K * LANE + LANE * LANE + LANE * LANE)
    bytes_accessed = (mpad * K * 2 + (w1.size + w2.size + w3.size) * 2
                      + 3 * LANE * 4 + mpad * LANE * 4)
    out = pl.pallas_call(
        _fc_fused_kernel,
        out_shape=jax.ShapeDtypeStruct((mpad, LANE), jnp.float32),
        grid=(mpad // tm,),
        in_specs=[
            pl.BlockSpec((tm, K), lambda i: (i, 0)),
            pl.BlockSpec(w1.shape, lambda i: (0, 0)),
            pl.BlockSpec((1, LANE), lambda i: (0, 0)),
            pl.BlockSpec(w2.shape, lambda i: (0, 0)),
            pl.BlockSpec((1, LANE), lambda i: (0, 0)),
            pl.BlockSpec(w3.shape, lambda i: (0, 0)),
            pl.BlockSpec((1, LANE), lambda i: (0, 0)),
        ],
        out_specs=pl.BlockSpec((tm, LANE), lambda i: (i, 0)),
        compiler_params=pltpu.CompilerParams(
            dimension_semantics=("parallel",)),
        cost_estimate=pl.CostEstimate(flops=flops, transcendentals=0,
                                      bytes_accessed=bytes_accessed),
    )(x, w1, b1, w2, b2, w3, b3)
    return out[:M]


def _im2col_pooled(x, k, kpad):
    """x:(N,H,W,C) NHWC -> (N*Hp*Wp, 4*kpad), pool-grouped im2col.

    Row r = pooled output pixel (n,a,b); for each 2x2-pool position s=(u,v)
    the k*k*C receptive-field features of conv pixel (2a+u, 2b+v), ordered
    (di,dj,c) and zero-padded to kpad, occupy lanes [s*kpad, (s+1)*kpad).
    Built with slices/concat/stack only -- no big transpose.
    """
    N, H, W, C = x.shape
    Ho, Wo = H - k + 1, W - k + 1
    Hp, Wp = Ho // 2, Wo // 2
    groups = []
    for u in range(2):
        for v in range(2):
            feats = []
            for di in range(k):
                for dj in range(k):
                    feats.append(x[:, u + di:u + di + 2 * Hp:2,
                                      v + dj:v + dj + 2 * Wp:2, :])
            g = jnp.concatenate(feats, axis=-1)                  # (N,Hp,Wp,k*k*C)
            g = jnp.pad(g, ((0, 0), (0, 0), (0, 0), (0, kpad - k * k * C)))
            groups.append(g)
    cols = jnp.stack(groups, axis=3)                             # (N,Hp,Wp,4,kpad)
    return cols.reshape(N * Hp * Wp, 4 * kpad), Hp, Wp


# ----------------------------- parameters ----------------------------------

def init_params(key):
    """PyTorch-layout params with PyTorch default uniform(+-1/sqrt(fan_in)) init."""
    ks = jax.random.split(key, 10)

    def u(k, shape, bound):
        return jax.random.uniform(k, shape, jnp.float32, -bound, bound)

    def conv_init(kw, kb, cout, cin, ksz):
        bound = 1.0 / math.sqrt(cin * ksz * ksz)
        return u(kw, (cout, cin, ksz, ksz), bound), u(kb, (cout,), bound)

    def fc_init(kw, kb, cout, cin):
        bound = 1.0 / math.sqrt(cin)
        return u(kw, (cout, cin), bound), u(kb, (cout,), bound)

    p = {}
    p["conv1_w"], p["conv1_b"] = conv_init(ks[0], ks[1], 6, 3, 5)
    p["conv2_w"], p["conv2_b"] = conv_init(ks[2], ks[3], 16, 6, 5)
    p["fc1_w"], p["fc1_b"] = fc_init(ks[4], ks[5], 120, 16 * 5 * 5)
    p["fc2_w"], p["fc2_b"] = fc_init(ks[6], ks[7], 84, 120)
    p["fc3_w"], p["fc3_b"] = fc_init(ks[8], ks[9], 10, 84)
    return p


def _pack_conv_w(w, kpad):
    cout, cin, k, _ = w.shape
    w2d = w.transpose(2, 3, 1, 0).reshape(k * k * cin, cout)     # rows (di,dj,c)
    w2d = jnp.pad(w2d, ((0, kpad - k * k * cin), (0, LANE - cout)))
    return w2d.astype(jnp.bfloat16)


def _pack_fc_w(w, kpad):
    cout, cin = w.shape
    return jnp.pad(w.T, ((0, kpad - cin), (0, LANE - cout))).astype(jnp.bfloat16)


def _pack_bias(b):
    return jnp.pad(b, (0, LANE - b.shape[0])).reshape(1, LANE).astype(jnp.float32)


def pack_params(p):
    """One-time repack: transpose / permute / zero-pad to lane-dense 128-wide
    outputs, cast MXU operands to bf16. Removes all per-forward layout work."""
    q = {}
    q["conv1_w"] = _pack_conv_w(p["conv1_w"], KPAD1)
    q["conv1_b"] = _pack_bias(p["conv1_b"])
    q["conv2_w"] = _pack_conv_w(p["conv2_w"], KPAD2)
    q["conv2_b"] = _pack_bias(p["conv2_b"])
    # fc1 input columns: PyTorch flatten order (c,h,w) -> NHWC order (h,w,c).
    w1 = p["fc1_w"].reshape(120, 16, 5, 5).transpose(0, 2, 3, 1).reshape(120, 400)
    q["fc1_w"] = _pack_fc_w(w1, KPAD_FC1)
    q["fc1_b"] = _pack_bias(p["fc1_b"])
    q["fc2_w"] = _pack_fc_w(p["fc2_w"], LANE)
    q["fc2_b"] = _pack_bias(p["fc2_b"])
    q["fc3_w"] = _pack_fc_w(p["fc3_w"], LANE)
    q["fc3_b"] = _pack_bias(p["fc3_b"])
    return q


# ----------------------------- forward --------------------------------------

@jax.jit
def net_forward(x, q):
    # x: (N, 3, 32, 32) f32 NCHW (PyTorch interface). Internally NHWC + bf16.
    n = x.shape[0]
    x = x.transpose(0, 2, 3, 1).astype(jnp.bfloat16)              # (N,32,32,3)

    cols1, hp1, wp1 = _im2col_pooled(x, 5, KPAD1)                 # (N*196, 512)
    a1 = conv_relu_pool(cols1, q["conv1_w"], q["conv1_b"])        # (N*196, 128)
    a1 = a1.reshape(n, hp1, wp1, LANE)[..., :6]                   # (N,14,14,6)

    cols2, hp2, wp2 = _im2col_pooled(a1, 5, KPAD2)                # (N*25, 1024)
    a2 = conv_relu_pool(cols2, q["conv2_w"], q["conv2_b"])        # (N*25, 128)
    a2 = a2.reshape(n, hp2, wp2, LANE)[..., :16]                  # (N,5,5,16)

    xf = a2.reshape(n, hp2 * wp2 * 16)                            # (N,400) NHWC
    xf = jnp.pad(xf, ((0, 0), (0, KPAD_FC1 - xf.shape[1])))       # (N,512)
    logits = fc_fused(xf, q["fc1_w"], q["fc1_b"], q["fc2_w"], q["fc2_b"],
                      q["fc3_w"], q["fc3_b"])                     # (N,128) f32
    return logits[:, :10]


if __name__ == "__main__":
    key = jax.random.PRNGKey(0)
    k_in, k_param = jax.random.split(key)
    # 32x32 input is required by the module's fixed 16*5*5 flatten.
    x = jax.random.normal(k_in, (2, 3, 32, 32), jnp.float32)
    params = pack_params(init_params(k_param))

    out = jax.block_until_ready(net_forward(x, params))
    assert out.shape == (2, 10) and out.dtype == jnp.float32
    assert bool(jnp.all(jnp.isfinite(out)))
    print("KERNEL_OK")
</pallas_src>

<mosaic_0001>
module attributes {stable_mosaic.version = 11 : i64} {
  func.func @_conv_relu_pool_kernel(%arg0: i32, %arg1: memref<256x512xbf16, #tpu.memory_space<vmem>>, %arg2: memref<128x128xbf16, #tpu.memory_space<vmem>>, %arg3: memref<1x128xf32, #tpu.memory_space<vmem>>, %arg4: memref<256x128xbf16, #tpu.memory_space<vmem>>) attributes {dimension_semantics = [#tpu.dimension_semantics<parallel>], iteration_bounds = array<i64: 2>, scalar_prefetch = 0 : i64, scratch_operands = 0 : i64, tpu.core_type = #tpu.core_type<tc>, window_params = [{transform_indices = @transform_0, window_bounds = array<i64: 256, 512>}, {pipeline_mode = #tpu.pipeline_mode<synchronous>, transform_indices = @transform_1, window_bounds = array<i64: 128, 128>}, {pipeline_mode = #tpu.pipeline_mode<synchronous>, transform_indices = @transform_2, window_bounds = array<i64: 1, 128>}, {transform_indices = @transform_3, window_bounds = array<i64: 256, 128>}]} {
    %c0 = arith.constant 0 : index
    %c0_0 = arith.constant 0 : index
    %0 = vector.load %arg2[%c0, %c0_0] : memref<128x128xbf16, #tpu.memory_space<vmem>>, vector<128x128xbf16>
    %c0_1 = arith.constant 0 : index
    %c0_2 = arith.constant 0 : index
    %1 = vector.load %arg1[%c0_1, %c0_2] : memref<256x512xbf16, #tpu.memory_space<vmem>>, vector<256x128xbf16>
    %cst = arith.constant dense<0.000000e+00> : vector<256x128xf32>
    %2 = tpu.matmul %1, %0, %cst {dimension_numbers = #tpu.dot_dimension_numbers<[1], [0], [0], [1], [0, 0, 1, 1], [], []>} : vector<256x128xbf16>, vector<128x128xbf16>, vector<256x128xf32> -> vector<256x128xf32>
    %c0_3 = arith.constant 0 : index
    %c128 = arith.constant 128 : index
    %3 = vector.load %arg1[%c0_3, %c128] : memref<256x512xbf16, #tpu.memory_space<vmem>>, vector<256x128xbf16>
    %cst_4 = arith.constant dense<0.000000e+00> : vector<256x128xf32>
    %4 = tpu.matmul %3, %0, %cst_4 {dimension_numbers = #tpu.dot_dimension_numbers<[1], [0], [0], [1], [0, 0, 1, 1], [], []>} : vector<256x128xbf16>, vector<128x128xbf16>, vector<256x128xf32> -> vector<256x128xf32>
    %5 = arith.maximumf %2, %4 : vector<256x128xf32>
    %c0_5 = arith.constant 0 : index
    %c256 = arith.constant 256 : index
    %6 = vector.load %arg1[%c0_5, %c256] : memref<256x512xbf16, #tpu.memory_space<vmem>>, vector<256x128xbf16>
    %cst_6 = arith.constant dense<0.000000e+00> : vector<256x128xf32>
    %7 = tpu.matmul %6, %0, %cst_6 {dimension_numbers = #tpu.dot_dimension_numbers<[1], [0], [0], [1], [0, 0, 1, 1], [], []>} : vector<256x128xbf16>, vector<128x128xbf16>, vector<256x128xf32> -> vector<256x128xf32>
    %8 = arith.maximumf %5, %7 : vector<256x128xf32>
    %c0_7 = arith.constant 0 : index
    %c384 = arith.constant 384 : index
    %9 = vector.load %arg1[%c0_7, %c384] : memref<256x512xbf16, #tpu.memory_space<vmem>>, vector<256x128xbf16>
    %cst_8 = arith.constant dense<0.000000e+00> : vector<256x128xf32>
    %10 = tpu.matmul %9, %0, %cst_8 {dimension_numbers = #tpu.dot_dimension_numbers<[1], [0], [0], [1], [0, 0, 1, 1], [], []>} : vector<256x128xbf16>, vector<128x128xbf16>, vector<256x128xf32> -> vector<256x128xf32>
    %11 = arith.maximumf %8, %10 : vector<256x128xf32>
    %c0_9 = arith.constant 0 : index
    %c0_10 = arith.constant 0 : index
    %12 = vector.load %arg3[%c0_9, %c0_10] : memref<1x128xf32, #tpu.memory_space<vmem>>, vector<1x128xf32>
    %13 = vector.broadcast %12 : vector<1x128xf32> to vector<256x128xf32>
    %14 = arith.addf %11, %13 : vector<256x128xf32>
    %cst_11 = arith.constant 0.000000e+00 : f32
    %15 = vector.broadcast %cst_11 : f32 to vector<256x128xf32>
    %16 = arith.maximumf %14, %15 : vector<256x128xf32>
    %17 = arith.truncf %16 : vector<256x128xf32> to vector<256x128xbf16>
    %c0_12 = arith.constant 0 : index
    %c0_13 = arith.constant 0 : index
    %18 = vector.load %arg4[%c0_12, %c0_13] : memref<256x128xbf16, #tpu.memory_space<vmem>>, vector<256x128xbf16>
    tpu.vector_store %arg4[%c0_12, %c0_13], %17 {strides = array<i32>} : memref<256x128xbf16, #tpu.memory_space<vmem>>, vector<256x128xbf16>,
    return
  }
  func.func @transform_0(%arg0: i32) -> (i32, i32) {
    %c0_i32 = arith.constant 0 : i32
    %c0_i32_0 = arith.constant 0 : i32
    return %arg0, %c0_i32 : i32, i32
  }
  func.func @transform_1(%arg0: i32) -> (i32, i32) {
    %c0_i32 = arith.constant 0 : i32
    %c0_i32_0 = arith.constant 0 : i32
    %c0_i32_1 = arith.constant 0 : i32
    return %c0_i32, %c0_i32_0 : i32, i32
  }
  func.func @transform_2(%arg0: i32) -> (i32, i32) {
    %c0_i32 = arith.constant 0 : i32
    %c0_i32_0 = arith.constant 0 : i32
    %c0_i32_1 = arith.constant 0 : i32
    return %c0_i32, %c0_i32_0 : i32, i32
  }
  func.func @transform_3(%arg0: i32) -> (i32, i32) {
    %c0_i32 = arith.constant 0 : i32
    %c0_i32_0 = arith.constant 0 : i32
    return %arg0, %c0_i32 : i32, i32
  }
}

module attributes {stable_mosaic.version = 11 : i64} {
  func.func @_conv_relu_pool_kernel(%arg0: i32, %arg1: memref<56x1024xbf16, #tpu.memory_space<vmem>>, %arg2: memref<256x128xbf16, #tpu.memory_space<vmem>>, %arg3: memref<1x128xf32, #tpu.memory_space<vmem>>, %arg4: memref<56x128xbf16, #tpu.memory_space<vmem>>) attributes {dimension_semantics = [#tpu.dimension_semantics<parallel>], iteration_bounds = array<i64: 1>, scalar_prefetch = 0 : i64, scratch_operands = 0 : i64, tpu.core_type = #tpu.core_type<tc>, window_params = [{transform_indices = @transform_0, window_bounds = array<i64: 56, 1024>}, {pipeline_mode = #tpu.pipeline_mode<synchronous>, transform_indices = @transform_1, window_bounds = array<i64: 256, 128>}, {pipeline_mode = #tpu.pipeline_mode<synchronous>, transform_indices = @transform_2, window_bounds = array<i64: 1, 128>}, {transform_indices = @transform_3, window_bounds = array<i64: 56, 128>}]} {
    %c0 = arith.constant 0 : index
    %c0_0 = arith.constant 0 : index
    %0 = vector.load %arg2[%c0, %c0_0] : memref<256x128xbf16, #tpu.memory_space<vmem>>, vector<256x128xbf16>
    %c0_1 = arith.constant 0 : index
    %c0_2 = arith.constant 0 : index
    %1 = vector.load %arg1[%c0_1, %c0_2] : memref<56x1024xbf16, #tpu.memory_space<vmem>>, vector<56x256xbf16>
    %cst = arith.constant dense<0.000000e+00> : vector<56x128xf32>
    %2 = tpu.matmul %1, %0, %cst {dimension_numbers = #tpu.dot_dimension_numbers<[1], [0], [0], [1], [0, 0, 1, 1], [], []>} : vector<56x256xbf16>, vector<256x128xbf16>, vector<56x128xf32> -> vector<56x128xf32>
    %c0_3 = arith.constant 0 : index
    %c256 = arith.constant 256 : index
    %3 = vector.load %arg1[%c0_3, %c256] : memref<56x1024xbf16, #tpu.memory_space<vmem>>, vector<56x256xbf16>
    %cst_4 = arith.constant dense<0.000000e+00> : vector<56x128xf32>
    %4 = tpu.matmul %3, %0, %cst_4 {dimension_numbers = #tpu.dot_dimension_numbers<[1], [0], [0], [1], [0, 0, 1, 1], [], []>} : vector<56x256xbf16>, vector<256x128xbf16>, vector<56x128xf32> -> vector<56x128xf32>
    %5 = arith.maximumf %2, %4 : vector<56x128xf32>
    %c0_5 = arith.constant 0 : index
    %c512 = arith.constant 512 : index
    %6 = vector.load %arg1[%c0_5, %c512] : memref<56x1024xbf16, #tpu.memory_space<vmem>>, vector<56x256xbf16>
    %cst_6 = arith.constant dense<0.000000e+00> : vector<56x128xf32>
    %7 = tpu.matmul %6, %0, %cst_6 {dimension_numbers = #tpu.dot_dimension_numbers<[1], [0], [0], [1], [0, 0, 1, 1], [], []>} : vector<56x256xbf16>, vector<256x128xbf16>, vector<56x128xf32> -> vector<56x128xf32>
    %8 = arith.maximumf %5, %7 : vector<56x128xf32>
    %c0_7 = arith.constant 0 : index
    %c768 = arith.constant 768 : index
    %9 = vector.load %arg1[%c0_7, %c768] : memref<56x1024xbf16, #tpu.memory_space<vmem>>, vector<56x256xbf16>
    %cst_8 = arith.constant dense<0.000000e+00> : vector<56x128xf32>
    %10 = tpu.matmul %9, %0, %cst_8 {dimension_numbers = #tpu.dot_dimension_numbers<[1], [0], [0], [1], [0, 0, 1, 1], [], []>} : vector<56x256xbf16>, vector<256x128xbf16>, vector<56x128xf32> -> vector<56x128xf32>
    %11 = arith.maximumf %8, %10 : vector<56x128xf32>
    %c0_9 = arith.constant 0 : index
    %c0_10 = arith.constant 0 : index
    %12 = vector.load %arg3[%c0_9, %c0_10] : memref<1x128xf32, #tpu.memory_space<vmem>>, vector<1x128xf32>
    %13 = vector.broadcast %12 : vector<1x128xf32> to vector<56x128xf32>
    %14 = arith.addf %11, %13 : vector<56x128xf32>
    %cst_11 = arith.constant 0.000000e+00 : f32
    %15 = vector.broadcast %cst_11 : f32 to vector<56x128xf32>
    %16 = arith.maximumf %14, %15 : vector<56x128xf32>
    %17 = arith.truncf %16 : vector<56x128xf32> to vector<56x128xbf16>
    %c0_12 = arith.constant 0 : index
    %c0_13 = arith.constant 0 : index
    %18 = vector.load %arg4[%c0_12, %c0_13] : memref<56x128xbf16, #tpu.memory_space<vmem>>, vector<56x128xbf16>
    tpu.vector_store %arg4[%c0_12, %c0_13], %17 {strides = array<i32>} : memref<56x128xbf16, #tpu.memory_space<vmem>>, vector<56x128xbf16>,
    return
  }
  func.func @transform_0(%arg0: i32) -> (i32, i32) {
    %c0_i32 = arith.constant 0 : i32
    %c0_i32_0 = arith.constant 0 : i32
    return %arg0, %c0_i32 : i32, i32
  }
  func.func @transform_1(%arg0: i32) -> (i32, i32) {
    %c0_i32 = arith.constant 0 : i32
    %c0_i32_0 = arith.constant 0 : i32
    %c0_i32_1 = arith.constant 0 : i32
    return %c0_i32, %c0_i32_0 : i32, i32
  }
  func.func @transform_2(%arg0: i32) -> (i32, i32) {
    %c0_i32 = arith.constant 0 : i32
    %c0_i32_0 = arith.constant 0 : i32
    %c0_i32_1 = arith.constant 0 : i32
    return %c0_i32, %c0_i32_0 : i32, i32
  }
  func.func @transform_3(%arg0: i32) -> (i32, i32) {
    %c0_i32 = arith.constant 0 : i32
    %c0_i32_0 = arith.constant 0 : i32
    return %arg0, %c0_i32 : i32, i32
  }
}

module attributes {stable_mosaic.version = 11 : i64} {
  func.func @_fc_fused_kernel(%arg0: i32, %arg1: memref<8x512xbf16, #tpu.memory_space<vmem>>, %arg2: memref<512x128xbf16, #tpu.memory_space<vmem>>, %arg3: memref<1x128xf32, #tpu.memory_space<vmem>>, %arg4: memref<128x128xbf16, #tpu.memory_space<vmem>>, %arg5: memref<1x128xf32, #tpu.memory_space<vmem>>, %arg6: memref<128x128xbf16, #tpu.memory_space<vmem>>, %arg7: memref<1x128xf32, #tpu.memory_space<vmem>>, %arg8: memref<8x128xf32, #tpu.memory_space<vmem>>) attributes {dimension_semantics = [#tpu.dimension_semantics<parallel>], iteration_bounds = array<i64: 1>, scalar_prefetch = 0 : i64, scratch_operands = 0 : i64, tpu.core_type = #tpu.core_type<tc>, window_params = [{transform_indices = @transform_0, window_bounds = array<i64: 8, 512>}, {pipeline_mode = #tpu.pipeline_mode<synchronous>, transform_indices = @transform_1, window_bounds = array<i64: 512, 128>}, {pipeline_mode = #tpu.pipeline_mode<synchronous>, transform_indices = @transform_2, window_bounds = array<i64: 1, 128>}, {pipeline_mode = #tpu.pipeline_mode<synchronous>, transform_indices = @transform_3, window_bounds = array<i64: 128, 128>}, {pipeline_mode = #tpu.pipeline_mode<synchronous>, transform_indices = @transform_4, window_bounds = array<i64: 1, 128>}, {pipeline_mode = #tpu.pipeline_mode<synchronous>, transform_indices = @transform_5, window_bounds = array<i64: 128, 128>}, {pipeline_mode = #tpu.pipeline_mode<synchronous>, transform_indices = @transform_6, window_bounds = array<i64: 1, 128>}, {transform_indices = @transform_7, window_bounds = array<i64: 8, 128>}]} {
    %c0 = arith.constant 0 : index
    %c0_0 = arith.constant 0 : index
    %0 = vector.load %arg1[%c0, %c0_0] : memref<8x512xbf16, #tpu.memory_space<vmem>>, vector<8x512xbf16>
    %c0_1 = arith.constant 0 : index
    %c0_2 = arith.constant 0 : index
    %1 = vector.load %arg2[%c0_1, %c0_2] : memref<512x128xbf16, #tpu.memory_space<vmem>>, vector<512x128xbf16>
    %cst = arith.constant dense<0.000000e+00> : vector<8x128xf32>
    %2 = tpu.matmul %0, %1, %cst {dimension_numbers = #tpu.dot_dimension_numbers<[1], [0], [0], [1], [0, 0, 1, 1], [], []>} : vector<8x512xbf16>, vector<512x128xbf16>, vector<8x128xf32> -> vector<8x128xf32>
    %c0_3 = arith.constant 0 : index
    %c0_4 = arith.constant 0 : index
    %3 = vector.load %arg3[%c0_3, %c0_4] : memref<1x128xf32, #tpu.memory_space<vmem>>, vector<1x128xf32>
    %4 = vector.broadcast %3 : vector<1x128xf32> to vector<8x128xf32>
    %5 = arith.addf %2, %4 : vector<8x128xf32>
    %cst_5 = arith.constant 0.000000e+00 : f32
    %6 = vector.broadcast %cst_5 : f32 to vector<8x128xf32>
    %7 = arith.maximumf %5, %6 : vector<8x128xf32>
    %8 = arith.truncf %7 : vector<8x128xf32> to vector<8x128xbf16>
    %c0_6 = arith.constant 0 : index
    %c0_7 = arith.constant 0 : index
    %9 = vector.load %arg4[%c0_6, %c0_7] : memref<128x128xbf16, #tpu.memory_space<vmem>>, vector<128x128xbf16>
    %cst_8 = arith.constant dense<0.000000e+00> : vector<8x128xf32>
    %10 = tpu.matmul %8, %9, %cst_8 {dimension_numbers = #tpu.dot_dimension_numbers<[1], [0], [0], [1], [0, 0, 1, 1], [], []>} : vector<8x128xbf16>, vector<128x128xbf16>, vector<8x128xf32> -> vector<8x128xf32>
    %c0_9 = arith.constant 0 : index
    %c0_10 = arith.constant 0 : index
    %11 = vector.load %arg5[%c0_9, %c0_10] : memref<1x128xf32, #tpu.memory_space<vmem>>, vector<1x128xf32>
    %12 = vector.broadcast %11 : vector<1x128xf32> to vector<8x128xf32>
    %13 = arith.addf %10, %12 : vector<8x128xf32>
    %cst_11 = arith.constant 0.000000e+00 : f32
    %14 = vector.broadcast %cst_11 : f32 to vector<8x128xf32>
    %15 = arith.maximumf %13, %14 : vector<8x128xf32>
    %16 = arith.truncf %15 : vector<8x128xf32> to vector<8x128xbf16>
    %c0_12 = arith.constant 0 : index
    %c0_13 = arith.constant 0 : index
    %17 = vector.load %arg6[%c0_12, %c0_13] : memref<128x128xbf16, #tpu.memory_space<vmem>>, vector<128x128xbf16>
    %cst_14 = arith.constant dense<0.000000e+00> : vector<8x128xf32>
    %18 = tpu.matmul %16, %17, %cst_14 {dimension_numbers = #tpu.dot_dimension_numbers<[1], [0], [0], [1], [0, 0, 1, 1], [], []>} : vector<8x128xbf16>, vector<128x128xbf16>, vector<8x128xf32> -> vector<8x128xf32>
    %c0_15 = arith.constant 0 : index
    %c0_16 = arith.constant 0 : index
    %19 = vector.load %arg7[%c0_15, %c0_16] : memref<1x128xf32, #tpu.memory_space<vmem>>, vector<1x128xf32>
    %20 = vector.broadcast %19 : vector<1x128xf32> to vector<8x128xf32>
    %21 = arith.addf %18, %20 : vector<8x128xf32>
    %c0_17 = arith.constant 0 : index
    %c0_18 = arith.constant 0 : index
    %22 = vector.load %arg8[%c0_17, %c0_18] : memref<8x128xf32, #tpu.memory_space<vmem>>, vector<8x128xf32>
    tpu.vector_store %arg8[%c0_17, %c0_18], %21 {strides = array<i32>} : memref<8x128xf32, #tpu.memory_space<vmem>>, vector<8x128xf32>,
    return
  }
  func.func @transform_0(%arg0: i32) -> (i32, i32) {
    %c0_i32 = arith.constant 0 : i32
    %c0_i32_0 = arith.constant 0 : i32
    return %arg0, %c0_i32 : i32, i32
  }
  func.func @transform_1(%arg0: i32) -> (i32, i32) {
    %c0_i32 = arith.constant 0 : i32
    %c0_i32_0 = arith.constant 0 : i32
    %c0_i32_1 = arith.constant 0 : i32
    return %c0_i32, %c0_i32_0 : i32, i32
  }
  func.func @transform_2(%arg0: i32) -> (i32, i32) {
    %c0_i32 = arith.constant 0 : i32
    %c0_i32_0 = arith.constant 0 : i32
    %c0_i32_1 = arith.constant 0 : i32
    return %c0_i32, %c0_i32_0 : i32, i32
  }
  func.func @transform_3(%arg0: i32) -> (i32, i32) {
    %c0_i32 = arith.constant 0 : i32
    %c0_i32_0 = arith.constant 0 : i32
    %c0_i32_1 = arith.constant 0 : i32
    return %c0_i32, %c0_i32_0 : i32, i32
  }
  func.func @transform_4(%arg0: i32) -> (i32, i32) {
    %c0_i32 = arith.constant 0 : i32
    %c0_i32_0 = arith.constant 0 : i32
    %c0_i32_1 = arith.constant 0 : i32
    return %c0_i32, %c0_i32_0 : i32, i32
  }
  func.func @transform_5(%arg0: i32) -> (i32, i32) {
    %c0_i32 = arith.constant 0 : i32
    %c0_i32_0 = arith.constant 0 : i32
    %c0_i32_1 = arith.constant 0 : i32
    return %c0_i32, %c0_i32_0 : i32, i32
  }
  func.func @transform_6(%arg0: i32) -> (i32, i32) {
    %c0_i32 = arith.constant 0 : i32
    %c0_i32_0 = arith.constant 0 : i32
    %c0_i32_1 = arith.constant 0 : i32
    return %c0_i32, %c0_i32_0 : i32, i32
  }
  func.func @transform_7(%arg0: i32) -> (i32, i32) {
    %c0_i32 = arith.constant 0 : i32
    %c0_i32_0 = arith.constant 0 : i32
    return %arg0, %c0_i32 : i32, i32
  }
}

</mosaic_0001>

<llo_original>
// kernel: net_forward.3
$region0: #{net_forward.3}
  #allocation0 [shape = 'u32[]', space=smem, size = 0x4, offset = 0x4, fixed_abs, tag = 'smem constant byte address 0x4 - core index']
  #allocation1 [shape = 'u32[144,128]{1,0:T(1,128)}', space=vmem, size = 0x12000, scoped, tag = 'internal scratch']
  %s0 = inlined_call_operand.vmem [shape: bf16[512,512], index: 0, kind: input, shape index: {}]
  %s1 = inlined_call_operand.vmem [shape: bf16[128,128], index: 1, kind: input, shape index: {}]
  %s2 = inlined_call_operand.vmem [shape: f32[1,128], index: 2, kind: input, shape index: {}]
  %s3 = inlined_call_operand.vmem [shape: bf16[512,128], index: 3, kind: output, shape index: {}]
  %s4 = sld [smem:[#allocation0]]
  $region45: #{net_forward.3} parent=0
    _
  %s6 = ssub.s32 1, %s4
  %s7 = scalar_select 0, %s6, %s4
  loop: start=0, step=1, limit=4
  $region2: #{net_forward.3} parent=0 // loop_pre_header
    _
  $region3: #{net_forward.3} parent=0 // loop_header
    %s9 = sphi 0, %s13
    %p10 = scmp.ge.s32.totalorder %s9, 4
    %s19 = sphi 0, %s21
    %s22 = sphi 0, %s19
    %s23 = sphi 0, %s22
    %s39 = sphi 0, %s23
    %s43 = sphi 0, %s43
    %s45 = sphi 0, %s43
    %s46 = sphi 0, %s45
    %s60 = sphi 0, %s46
    %s64 = sphi 0, %s64
    %s66 = sphi 0, %s64
    %s67 = sphi 0, %s66
    %s81 = sphi 0, %s67
    %s87 = sphi 0, %s89
    %s90 = sphi 0, %s87
    %s91 = sphi 0, %s90
    %s107 = sphi 0, %s91
  $region4: #{net_forward.3} parent=0 // loop_header_branch
    %12 = sbr.rel (%p10) target = $region8
  $region5: #{net_forward.3} parent=0 // loop_body
    %s14 = ssub.s32 %s9, 1
    %s15 = ssub.s32 %s9, 2
    %s16 = sadd.s32 %s9, 1
    %s17 = ssub.s32 %s9, %s16
    %p18 = scmp.eq.s32.totalorder %s17, 0
    %s20 = sadd.s32 %s19, 1
    %s21 = scalar_select %p18, %s19, %s20
    %p24 = pneg %p18
    %p25 = scmp.eq.s32.totalorder %s9, 1
    %p26 = por %p24, %p25
    %p27 = scmp.ne.s32.totalorder %s19, %s22
    %p28 = scmp.eq.s32.totalorder %s9, 0
    %p29 = por %p27, %p28
    %p30 = scmp.ne.s32.totalorder %s19, %s22
    %p31 = scmp.eq.s32.totalorder %s14, 1
    %p32 = por %p30, %p31
    %p33 = scmp.ne.s32.totalorder %s22, %s23
    %p34 = scmp.eq.s32.totalorder %s14, 0
    %p35 = por %p33, %p34
    %p36 = scmp.ne.s32.totalorder %s22, %s23
    %p37 = scmp.eq.s32.totalorder %s15, 1
    %p38 = por %p36, %p37
    %p40 = scmp.ne.s32.totalorder %s23, %s39
    %p41 = scmp.eq.s32.totalorder %s15, 0
    %p42 = por %p40, %p41
    %s44 = sadd.s32 %s43, 1
    %p47 = scmp.eq.s32.totalorder %s9, 1
    %p48 = scmp.ne.s32.totalorder %s43, %s45
    %p49 = scmp.eq.s32.totalorder %s9, 0
    %p50 = por %p48, %p49
    %p51 = scmp.ne.s32.totalorder %s43, %s45
    %p52 = scmp.eq.s32.totalorder %s14, 1
    %p53 = por %p51, %p52
    %p54 = scmp.ne.s32.totalorder %s45, %s46
    %p55 = scmp.eq.s32.totalorder %s14, 0
    %p56 = por %p54, %p55
    %p57 = scmp.ne.s32.totalorder %s45, %s46
    %p58 = scmp.eq.s32.totalorder %s15, 1
    %p59 = por %p57, %p58
    %p61 = scmp.ne.s32.totalorder %s46, %s60
    %p62 = scmp.eq.s32.totalorder %s15, 0
    %p63 = por %p61, %p62
    %s65 = sadd.s32 %s64, 1
    %p68 = scmp.eq.s32.totalorder %s9, 1
    %p69 = scmp.ne.s32.totalorder %s64, %s66
    %p70 = scmp.eq.s32.totalorder %s9, 0
    %p71 = por %p69, %p70
    %p72 = scmp.ne.s32.totalorder %s64, %s66
    %p73 = scmp.eq.s32.totalorder %s14, 1
    %p74 = por %p72, %p73
    %p75 = scmp.ne.s32.totalorder %s66, %s67
    %p76 = scmp.eq.s32.totalorder %s14, 0
    %p77 = por %p75, %p76
    %p78 = scmp.ne.s32.totalorder %s66, %s67
    %p79 = scmp.eq.s32.totalorder %s15, 1
    %p80 = por %p78, %p79
    %p82 = scmp.ne.s32.totalorder %s67, %s81
    %p83 = scmp.eq.s32.totalorder %s15, 0
    %p84 = por %p82, %p83
    %s85 = ssub.s32 %s9, %s16
    %p86 = scmp.eq.s32.totalorder %s85, 0
    %s88 = sadd.s32 %s87, 1
    %s89 = scalar_select %p86, %s87, %s88
    %p92 = pneg %p86
    %p93 = scmp.eq.s32.totalorder %s9, 1
    %p94 = por %p92, %p93
    %p95 = scmp.ne.s32.totalorder %s87, %s90
    %p96 = scmp.eq.s32.totalorder %s9, 0
    %p97 = por %p95, %p96
    %p98 = scmp.ne.s32.totalorder %s87, %s90
    %p99 = scmp.eq.s32.totalorder %s14, 1
    %p100 = por %p98, %p99
    %p101 = scmp.ne.s32.totalorder %s90, %s91
    %p102 = scmp.eq.s32.totalorder %s14, 0
    %p103 = por %p101, %p102
    %p104 = scmp.ne.s32.totalorder %s90, %s91
    %p105 = scmp.eq.s32.totalorder %s15, 1
    %p106 = por %p104, %p105
    %p108 = scmp.ne.s32.totalorder %s91, %s107
    %p109 = scmp.eq.s32.totalorder %s15, 0
    %p110 = por %p108, %p109
    %p111 = scmp.le.s32.totalorder 1, %s9
    %p112 = scmp.lt.s32.totalorder %s9, 3
    %p113 = pnand %p111, %p112
    %p114 = pneg %p113
    // Predicated region
    $region9: #{net_forward.3} parent=5 // pred_check
      _
    $region10: #{net_forward.3} parent=5 // pred_check_branch
      %116 = sbr.rel (%p113) target = $region12
    $region11: #{net_forward.3} parent=5 // pred_region
      %s117 = ssub.s32 %s9, 1
      // Predicated region
      $region13: #{net_forward.3} parent=11 // pred_check
        %p118 = pneg %p56
      $region14: #{net_forward.3} parent=11 // pred_check_branch
        %120 = sbr.rel (%p118) target = $region16
      $region15: #{net_forward.3} parent=11 // pred_region
        _
      $region16: #{net_forward.3} parent=11 // pred_fallthru
        _
      // Predicated region
      $region17: #{net_forward.3} parent=11 // pred_check
        %p121 = pneg %p77
      $region18: #{net_forward.3} parent=11 // pred_check_branch
        %123 = sbr.rel (%p121) target = $region20
      $region19: #{net_forward.3} parent=11 // pred_region
        _
      $region20: #{net_forward.3} parent=11 // pred_fallthru
        _
    $region12: #{net_forward.3} parent=5 // pred_fallthru
      _
    %p124 = scmp.lt.s32.totalorder %s9, 2
    // Predicated region
    $region21: #{net_forward.3} parent=5 // pred_check
      %p125 = pneg %p124
    $region22: #{net_forward.3} parent=5 // pred_check_branch
      %127 = sbr.rel (%p125) target = $region24
    $region23: #{net_forward.3} parent=5 // pred_region
      // Predicated region
      $region25: #{net_forward.3} parent=23 // pred_check
        %p128 = pneg %p29
      $region26: #{net_forward.3} parent=23 // pred_check_branch
        %130 = sbr.rel (%p128) target = $region28
      $region27: #{net_forward.3} parent=23 // pred_region
        %s131 = smul.u32 32, %s9
        %p132 = scmp.lt.s32.totalorder %s131, 63
        %s133 = scalar_select %p132, %s131, 63
        %s134 = smul.addr %s133, 4
        %s135 = smul.addr %s134, 4
        %s136 = scalar_lea.vmem %s0, %s135
        %s137 = smul.u32 32, %s9
      $region28: #{net_forward.3} parent=23 // pred_fallthru
        _
    $region24: #{net_forward.3} parent=5 // pred_fallthru
      _
    %p138 = scmp.le.s32.totalorder 1, %s9
    %p139 = scmp.lt.s32.totalorder %s9, 3
    %p140 = pnand %p138, %p139
    %p141 = pneg %p140
    // Predicated region
    $region29: #{net_forward.3} parent=5 // pred_check
      _
    $region30: #{net_forward.3} parent=5 // pred_check_branch
      %143 = sbr.rel (%p140) target = $region32
    $region31: #{net_forward.3} parent=5 // pred_region
      %s144 = ssub.s32 %s9, 1
      %s145 = smul.u32 32, %s14
      %p146 = scmp.lt.s32.totalorder %s145, 63
      %s147 = scalar_select %p146, %s145, 63
      %s148 = smul.addr %s147, 4
      %s149 = smul.addr %s148, 4
      %s150 = scalar_lea.vmem %s0, %s149
      %p151 = pneg %p35
      %p152 = pneg %p32
      %p153 = pneg %p56
      %p154 = pneg %p53
      %p155 = pneg %p77
      %p156 = pneg %p74
      %p157 = pneg %p103
      %p158 = pneg %p100
      %s159 = smul.u32 32, %s14
      %p160 = scmp.lt.s32.totalorder %s159, 63
      %s161 = scalar_select %p160, %s159, 63
      %s162 = smul.addr %s161, 4
      %s163 = scalar_lea.vmem %s3, %s162
      %s164 = smul.u32 32, %s14
      %p165 = scmp.lt.s32.totalorder %s164, 63
      %s166 = scalar_select %p165, %s164, 63
      %s167 = smul.addr %s166, 4
      %s168 = smul.addr %s167, 4
      %s169 = scalar_lea.vmem %s0, %s168
      %s170 = smul.u32 32, %s14
      %s171 = smul.u32 32, %s14
      %p172 = scmp.lt.s32.totalorder %s171, 63
      %s173 = scalar_select %p172, %s171, 63
      %s174 = smul.addr %s173, 4
      %s175 = scalar_lea.vmem %s3, %s174
      %s176 = smul.u32 32, %s14
      %v178 = vld [vmem:[%s1] sm:$0xf]
      %v179 = vld [vmem:[%s1 + $0x4] sm:$0xf]
      %v180 = vld [vmem:[%s1 + $0x8] sm:$0xf]
      %v181 = vld [vmem:[%s1 + $0xc] sm:$0xf]
      %v182 = vld [vmem:[%s1 + $0x10] sm:$0xf]
      %v183 = vld [vmem:[%s1 + $0x14] sm:$0xf]
      %v184 = vld [vmem:[%s1 + $0x18] sm:$0xf]
      %v185 = vld [vmem:[%s1 + $0x1c] sm:$0xf]
      %v186 = vld [vmem:[%s1 + $0x20] sm:$0xf]
      %v187 = vld [vmem:[%s1 + $0x24] sm:$0xf]
      %v188 = vld [vmem:[%s1 + $0x28] sm:$0xf]
      %v189 = vld [vmem:[%s1 + $0x2c] sm:$0xf]
      %v190 = vld [vmem:[%s1 + $0x30] sm:$0xf]
      %v191 = vld [vmem:[%s1 + $0x34] sm:$0xf]
      %v192 = vld [vmem:[%s1 + $0x38] sm:$0xf]
      %v193 = vld [vmem:[%s1 + $0x3c] sm:$0xf]
      %v194 = vld [vmem:[%s169] sm:$0xf]
      %v195 = vld [vmem:[%s169 + $0x10] sm:$0xf]
      %v196 = vld [vmem:[%s169 + $0x20] sm:$0xf]
      %v197 = vld [vmem:[%s169 + $0x30] sm:$0xf]
      %v198 = vld [vmem:[%s169 + $0x40] sm:$0xf]
      %v199 = vld [vmem:[%s169 + $0x50] sm:$0xf]
      %v200 = vld [vmem:[%s169 + $0x60] sm:$0xf]
      %v201 = vld [vmem:[%s169 + $0x70] sm:$0xf]
      %v202 = vld [vmem:[%s169 + $0x80] sm:$0xf]
      %v203 = vld [vmem:[%s169 + $0x90] sm:$0xf]
      %v204 = vld [vmem:[%s169 + $0xa0] sm:$0xf]
      %v205 = vld [vmem:[%s169 + $0xb0] sm:$0xf]
      %v206 = vld [vmem:[%s169 + $0xc0] sm:$0xf]
      %v207 = vld [vmem:[%s169 + $0xd0] sm:$0xf]
      %v208 = vld [vmem:[%s169 + $0xe0] sm:$0xf]
      %v209 = vld [vmem:[%s169 + $0xf0] sm:$0xf]
      %v210 = vld [vmem:[%s169 + $0x100] sm:$0xf]
      %v211 = vld [vmem:[%s169 + $0x110] sm:$0xf]
      %v212 = vld [vmem:[%s169 + $0x120] sm:$0xf]
      %v213 = vld [vmem:[%s169 + $0x130] sm:$0xf]
      %v214 = vld [vmem:[%s169 + $0x140] sm:$0xf]
      %v215 = vld [vmem:[%s169 + $0x150] sm:$0xf]
      %v216 = vld [vmem:[%s169 + $0x160] sm:$0xf]
      %v217 = vld [vmem:[%s169 + $0x170] sm:$0xf]
      %v218 = vld [vmem:[%s169 + $0x180] sm:$0xf]
      %v219 = vld [vmem:[%s169 + $0x190] sm:$0xf]
      %v220 = vld [vmem:[%s169 + $0x1a0] sm:$0xf]
      %v221 = vld [vmem:[%s169 + $0x1b0] sm:$0xf]
      %v222 = vld [vmem:[%s169 + $0x1c0] sm:$0xf]
      %v223 = vld [vmem:[%s169 + $0x1d0] sm:$0xf]
      %v224 = vld [vmem:[%s169 + $0x1e0] sm:$0xf]
      %v225 = vld [vmem:[%s169 + $0x1f0] sm:$0xf]
      %v258 = vunpack.c.l.b16 %v194
      %v259 = vunpack.c.l.b16 %v195
      %v260 = vunpack.c.l.b16 %v196
      %v261 = vunpack.c.l.b16 %v197
      %v262 = vunpack.c.l.b16 %v198
      %v263 = vunpack.c.l.b16 %v199
      %v264 = vunpack.c.l.b16 %v200
      %v265 = vunpack.c.l.b16 %v201
      %v266 = vunpack.c.l.b16 %v202
      %v267 = vunpack.c.l.b16 %v203
      %v268 = vunpack.c.l.b16 %v204
      %v269 = vunpack.c.l.b16 %v205
      %v270 = vunpack.c.l.b16 %v206
      %v271 = vunpack.c.l.b16 %v207
      %v272 = vunpack.c.l.b16 %v208
      %v273 = vunpack.c.l.b16 %v209
      %v274 = vunpack.c.l.b16 %v210
      %v275 = vunpack.c.l.b16 %v211
      %v276 = vunpack.c.l.b16 %v212
      %v277 = vunpack.c.l.b16 %v213
      %v278 = vunpack.c.l.b16 %v214
      %v279 = vunpack.c.l.b16 %v215
      %v280 = vunpack.c.l.b16 %v216
      %v281 = vunpack.c.l.b16 %v217
      %v282 = vunpack.c.l.b16 %v218
      %v283 = vunpack.c.l.b16 %v219
      %v284 = vunpack.c.l.b16 %v220
      %v285 = vunpack.c.l.b16 %v221
      %v286 = vunpack.c.l.b16 %v222
      %v287 = vunpack.c.l.b16 %v223
      %v288 = vunpack.c.l.b16 %v224
      %v289 = vunpack.c.l.b16 %v225
      %v290 = vpack.c.b16 %v259, %v258
      %v291 = vpack.c.b16 %v261, %v260
      %v292 = vpack.c.b16 %v263, %v262
      %v293 = vpack.c.b16 %v265, %v264
      %v294 = vpack.c.b16 %v267, %v266
      %v295 = vpack.c.b16 %v269, %v268
      %v296 = vpack.c.b16 %v271, %v270
      %v297 = vpack.c.b16 %v273, %v272
      %v298 = vpack.c.b16 %v275, %v274
      %v299 = vpack.c.b16 %v277, %v276
      %v300 = vpack.c.b16 %v279, %v278
      %v301 = vpack.c.b16 %v281, %v280
      %v302 = vpack.c.b16 %v283, %v282
      %v303 = vpack.c.b16 %v285, %v284
      %v304 = vpack.c.b16 %v287, %v286
      %v305 = vpack.c.b16 %v289, %v288
      %v338 = vunpack.c.l.b16 %v178
      %v339 = vunpack.c.l.b16 %v179
      %v340 = vunpack.c.l.b16 %v180
      %v341 = vunpack.c.l.b16 %v181
      %v342 = vunpack.c.l.b16 %v182
      %v343 = vunpack.c.l.b16 %v183
      %v344 = vunpack.c.l.b16 %v184
      %v345 = vunpack.c.l.b16 %v185
      %v346 = vunpack.c.l.b16 %v186
      %v347 = vunpack.c.l.b16 %v187
      %v348 = vunpack.c.l.b16 %v188
      %v349 = vunpack.c.l.b16 %v189
      %v350 = vunpack.c.l.b16 %v190
      %v351 = vunpack.c.l.b16 %v191
      %v352 = vunpack.c.l.b16 %v192
      %v353 = vunpack.c.l.b16 %v193
      %v354 = vpack.c.b16 %v339, %v338
      %v355 = vpack.c.b16 %v341, %v340
      %v356 = vpack.c.b16 %v343, %v342
      %v357 = vpack.c.b16 %v345, %v344
      %v358 = vpack.c.b16 %v347, %v346
      %v359 = vpack.c.b16 %v349, %v348
      %v360 = vpack.c.b16 %v351, %v350
      %v361 = vpack.c.b16 %v353, %v352
      %370 = vmatprep.subr.bf16.mxu0 0
      %371 = vmatpush1.bf16.msra.mxu0 %v354
      %372 = vmatprep.subr.bf16.mxu0 0
      %373 = vmatpush1.bf16.msra.mxu0 %v355
      %374 = vmatprep.subr.bf16.mxu0 0
      %375 = vmatpush1.bf16.msra.mxu0 %v356
      %376 = vmatprep.subr.bf16.mxu0 0
      %377 = vmatpush1.bf16.msra.mxu0 %v357
      %378 = vmatprep.subr.bf16.mxu0 0
      %379 = vmatpush1.bf16.msra.mxu0 %v358
      %380 = vmatprep.subr.bf16.mxu0 0
      %381 = vmatpush1.bf16.msra.mxu0 %v359
      %382 = vmatprep.subr.bf16.mxu0 0
      %383 = vmatpush1.bf16.msra.mxu0 %v360
      %384 = vmatprep.subr.bf16.mxu0 0
      %385 = vmatpush1.bf16.msra.mxu0 %v361
      %386 = vmatprep.subr.bf16.mxu0 0
      %387 = vmatpush1.bf16.msra.mxu0 0
      %388 = vmatprep.subr.bf16.mxu0 0
      %389 = vmatpush1.bf16.msra.mxu0 0
      %390 = vmatprep.subr.bf16.mxu0 0
      %391 = vmatpush1.bf16.msra.mxu0 0
      %392 = vmatprep.subr.bf16.mxu0 0
      %393 = vmatpush1.bf16.msra.mxu0 0
      %394 = vmatprep.subr.bf16.mxu0 0
      %395 = vmatpush1.bf16.msra.mxu0 0
      %396 = vmatprep.subr.bf16.mxu0 0
      %397 = vmatpush1.bf16.msra.mxu0 0
      %398 = vmatprep.subr.bf16.mxu0 0
      %399 = vmatpush1.bf16.msra.mxu0 0
      %400 = vmatprep.subr.bf16.mxu0 0
      %401 = vmatpush1.bf16.msra.mxu0 0
      %402 = vmatprep.mubr.bf16.mxu0 0
      %403 = vmatmul.mubr.bf16.gmra.mrb[0].mxu0 %v290
      %v404 = vpop.f32.mrb[0].mxu0
      %v405 = vadd.f32 0.0, %v404
      %v406 = vpop.f32.mrb[0].mxu0
      %v407 = vpop.f32.mrb[0].mxu0
      %v408 = vadd.f32 0.0, %v407
      %v409 = vpop.f32.mrb[0].mxu0
      %410 = vmatprep.mubr.bf16.mxu0 0
      %411 = vmatmul.mubr.bf16.gmra.mrb[0].mxu0 %v291
      %v412 = vpop.f32.mrb[0].mxu0
      %v413 = vadd.f32 0.0, %v412
      %v414 = vpop.f32.mrb[0].mxu0
      %v415 = vpop.f32.mrb[0].mxu0
      %v416 = vadd.f32 0.0, %v415
      %v417 = vpop.f32.mrb[0].mxu0
      %418 = vmatprep.mubr.bf16.mxu0 0
      %419 = vmatmul.mubr.bf16.gmra.mrb[0].mxu0 %v292
      %v420 = vpop.f32.mrb[0].mxu0
      %v421 = vadd.f32 0.0, %v420
      %v422 = vpop.f32.mrb[0].mxu0
      %v423 = vpop.f32.mrb[0].mxu0
      %v424 = vadd.f32 0.0, %v423
      %v425 = vpop.f32.mrb[0].mxu0
      %426 = vmatprep.mubr.bf16.mxu0 0
      %427 = vmatmul.mubr.bf16.gmra.mrb[0].mxu0 %v293
      %v428 = vpop.f32.mrb[0].mxu0
      %v429 = vadd.f32 0.0, %v428
      %v430 = vpop.f32.mrb[0].mxu0
      %v431 = vpop.f32.mrb[0].mxu0
      %v432 = vadd.f32 0.0, %v431
      %v433 = vpop.f32.mrb[0].mxu0
      %434 = vmatprep.mubr.bf16.mxu0 0
      %435 = vmatmul.mubr.bf16.gmra.mrb[0].mxu0 %v294
      %v436 = vpop.f32.mrb[0].mxu0
      %v437 = vadd.f32 0.0, %v436
      %v438 = vpop.f32.mrb[0].mxu0
      %v439 = vpop.f32.mrb[0].mxu0
      %v440 = vadd.f32 0.0, %v439
      %v441 = vpop.f32.mrb[0].mxu0
      %442 = vmatprep.mubr.bf16.mxu0 0
      %443 = vmatmul.mubr.bf16.gmra.mrb[0].mxu0 %v295
      %v444 = vpop.f32.mrb[0].mxu0
      %v445 = vadd.f32 0.0, %v444
      %v446 = vpop.f32.mrb[0].mxu0
      %v447 = vpop.f32.mrb[0].mxu0
      %v448 = vadd.f32 0.0, %v447
      %v449 = vpop.f32.mrb[0].mxu0
      %450 = vmatprep.mubr.bf16.mxu0 0
      %451 = vmatmul.mubr.bf16.gmra.mrb[0].mxu0 %v296
      %v452 = vpop.f32.mrb[0].mxu0
      %v453 = vadd.f32 0.0, %v452
      %v454 = vpop.f32.mrb[0].mxu0
      %v455 = vpop.f32.mrb[0].mxu0
      %v456 = vadd.f32 0.0, %v455
      %v457 = vpop.f32.mrb[0].mxu0
      %458 = vmatprep.mubr.bf16.mxu0 0
      %459 = vmatmul.mubr.bf16.gmra.mrb[0].mxu0 %v297
      %v460 = vpop.f32.mrb[0].mxu0
      %v461 = vadd.f32 0.0, %v460
      %v462 = vpop.f32.mrb[0].mxu0
      %v463 = vpop.f32.mrb[0].mxu0
      %v464 = vadd.f32 0.0, %v463
      %v465 = vpop.f32.mrb[0].mxu0
      %466 = vmatprep.mubr.bf16.mxu0 0
      %467 = vmatmul.mubr.bf16.gmra.mrb[0].mxu0 %v298
      %v468 = vpop.f32.mrb[0].mxu0
      %v469 = vadd.f32 0.0, %v468
      %v470 = vpop.f32.mrb[0].mxu0
      %v471 = vpop.f32.mrb[0].mxu0
      %v472 = vadd.f32 0.0, %v471
      %v473 = vpop.f32.mrb[0].mxu0
      %474 = vmatprep.mubr.bf16.mxu0 0
      %475 = vmatmul.mubr.bf16.gmra.mrb[0].mxu0 %v299
      %v476 = vpop.f32.mrb[0].mxu0
      %v477 = vadd.f32 0.0, %v476
      %v478 = vpop.f32.mrb[0].mxu0
      %v479 = vpop.f32.mrb[0].mxu0
      %v480 = vadd.f32 0.0, %v479
      %v481 = vpop.f32.mrb[0].mxu0
      %482 = vmatprep.mubr.bf16.mxu0 0
      %483 = vmatmul.mubr.bf16.gmra.mrb[0].mxu0 %v300
      %v484 = vpop.f32.mrb[0].mxu0
      %v485 = vadd.f32 0.0, %v484
      %v486 = vpop.f32.mrb[0].mxu0
      %v487 = vpop.f32.mrb[0].mxu0
      %v488 = vadd.f32 0.0, %v487
      %v489 = vpop.f32.mrb[0].mxu0
      %490 = vmatprep.mubr.bf16.mxu0 0
      %491 = vmatmul.mubr.bf16.gmra.mrb[0].mxu0 %v301
      %v492 = vpop.f32.mrb[0].mxu0
      %v493 = vadd.f32 0.0, %v492
      %v494 = vpop.f32.mrb[0].mxu0
      %v495 = vpop.f32.mrb[0].mxu0
      %v496 = vadd.f32 0.0, %v495
      %v497 = vpop.f32.mrb[0].mxu0
      %498 = vmatprep.mubr.bf16.mxu0 0
      %499 = vmatmul.mubr.bf16.gmra.mrb[0].mxu0 %v302
      %v500 = vpop.f32.mrb[0].mxu0
      %v501 = vadd.f32 0.0, %v500
      %v502 = vpop.f32.mrb[0].mxu0
      %v503 = vpop.f32.mrb[0].mxu0
      %v504 = vadd.f32 0.0, %v503
      %v505 = vpop.f32.mrb[0].mxu0
      %506 = vmatprep.mubr.bf16.mxu0 0
      %507 = vmatmul.mubr.bf16.gmra.mrb[0].mxu0 %v303
      %v508 = vpop.f32.mrb[0].mxu0
      %v509 = vadd.f32 0.0, %v508
      %v510 = vpop.f32.mrb[0].mxu0
      %v511 = vpop.f32.mrb[0].mxu0
      %v512 = vadd.f32 0.0, %v511
      %v513 = vpop.f32.mrb[0].mxu0
      %514 = vmatprep.mubr.bf16.mxu0 0
      %515 = vmatmul.mubr.bf16.gmra.mrb[0].mxu0 %v304
      %v516 = vpop.f32.mrb[0].mxu0
      %v517 = vadd.f32 0.0, %v516
      %v518 = vpop.f32.mrb[0].mxu0
      %v519 = vpop.f32.mrb[0].mxu0
      %v520 = vadd.f32 0.0, %v519
      %v521 = vpop.f32.mrb[0].mxu0
      %522 = vmatprep.mubr.bf16.mxu0 0
      %523 = vmatmul.mubr.bf16.gmra.mrb[0].mxu0 %v305
      %v524 = vpop.f32.mrb[0].mxu0
      %v525 = vadd.f32 0.0, %v524
      %v526 = vpop.f32.mrb[0].mxu0
      %v527 = vpop.f32.mrb[0].mxu0
      %v528 = vadd.f32 0.0, %v527
      %v529 = vpop.f32.mrb[0].mxu0
      %530 = vdwg.mxu0
      %v531 = vld [vmem:[%s169 + $0x4] sm:$0xf]
      %v532 = vld [vmem:[%s169 + $0x14] sm:$0xf]
      %v533 = vld [vmem:[%s169 + $0x24] sm:$0xf]
      %v534 = vld [vmem:[%s169 + $0x34] sm:$0xf]
      %v535 = vld [vmem:[%s169 + $0x44] sm:$0xf]
      %v536 = vld [vmem:[%s169 + $0x54] sm:$0xf]
      %v537 = vld [vmem:[%s169 + $0x64] sm:$0xf]
      %v538 = vld [vmem:[%s169 + $0x74] sm:$0xf]
      %v539 = vld [vmem:[%s169 + $0x84] sm:$0xf]
      %v540 = vld [vmem:[%s169 + $0x94] sm:$0xf]
      %v541 = vld [vmem:[%s169 + $0xa4] sm:$0xf]
      %v542 = vld [vmem:[%s169 + $0xb4] sm:$0xf]
      %v543 = vld [vmem:[%s169 + $0xc4] sm:$0xf]
      %v544 = vld [vmem:[%s169 + $0xd4] sm:$0xf]
      %v545 = vld [vmem:[%s169 + $0xe4] sm:$0xf]
      %v546 = vld [vmem:[%s169 + $0xf4] sm:$0xf]
      %v547 = vld [vmem:[%s169 + $0x104] sm:$0xf]
      %v548 = vld [vmem:[%s169 + $0x114] sm:$0xf]
      %v549 = vld [vmem:[%s169 + $0x124] sm:$0xf]
      %v550 = vld [vmem:[%s169 + $0x134] sm:$0xf]
      %v551 = vld [vmem:[%s169 + $0x144] sm:$0xf]
      %v552 = vld [vmem:[%s169 + $0x154] sm:$0xf]
      %v553 = vld [vmem:[%s169 + $0x164] sm:$0xf]
      %v554 = vld [vmem:[%s169 + $0x174] sm:$0xf]
      %v555 = vld [vmem:[%s169 + $0x184] sm:$0xf]
      %v556 = vld [vmem:[%s169 + $0x194] sm:$0xf]
      %v557 = vld [vmem:[%s169 + $0x1a4] sm:$0xf]
      %v558 = vld [vmem:[%s169 + $0x1b4] sm:$0xf]
      %v559 = vld [vmem:[%s169 + $0x1c4] sm:$0xf]
      %v560 = vld [vmem:[%s169 + $0x1d4] sm:$0xf]
      %v561 = vld [vmem:[%s169 + $0x1e4] sm:$0xf]
      %v562 = vld [vmem:[%s169 + $0x1f4] sm:$0xf]
      %v595 = vunpack.c.l.b16 %v531
      %v596 = vunpack.c.l.b16 %v532
      %v597 = vunpack.c.l.b16 %v533
      %v598 = vunpack.c.l.b16 %v534
      %v599 = vunpack.c.l.b16 %v535
      %v600 = vunpack.c.l.b16 %v536
      %v601 = vunpack.c.l.b16 %v537
      %v602 = vunpack.c.l.b16 %v538
      %v603 = vunpack.c.l.b16 %v539
      %v604 = vunpack.c.l.b16 %v540
      %v605 = vunpack.c.l.b16 %v541
      %v606 = vunpack.c.l.b16 %v542
      %v607 = vunpack.c.l.b16 %v543
      %v608 = vunpack.c.l.b16 %v544
      %v609 = vunpack.c.l.b16 %v545
      %v610 = vunpack.c.l.b16 %v546
      %v611 = vunpack.c.l.b16 %v547
      %v612 = vunpack.c.l.b16 %v548
      %v613 = vunpack.c.l.b16 %v549
      %v614 = vunpack.c.l.b16 %v550
      %v615 = vunpack.c.l.b16 %v551
      %v616 = vunpack.c.l.b16 %v552
      %v617 = vunpack.c.l.b16 %v553
      %v618 = vunpack.c.l.b16 %v554
      %v619 = vunpack.c.l.b16 %v555
      %v620 = vunpack.c.l.b16 %v556
      %v621 = vunpack.c.l.b16 %v557
      %v622 = vunpack.c.l.b16 %v558
      %v623 = vunpack.c.l.b16 %v559
      %v624 = vunpack.c.l.b16 %v560
      %v625 = vunpack.c.l.b16 %v561
      %v626 = vunpack.c.l.b16 %v562
      %v627 = vpack.c.b16 %v596, %v595
      %v628 = vpack.c.b16 %v598, %v597
      %v629 = vpack.c.b16 %v600, %v599
      %v630 = vpack.c.b16 %v602, %v601
      %v631 = vpack.c.b16 %v604, %v603
      %v632 = vpack.c.b16 %v606, %v605
      %v633 = vpack.c.b16 %v608, %v607
      %v634 = vpack.c.b16 %v610, %v609
      %v635 = vpack.c.b16 %v612, %v611
      %v636 = vpack.c.b16 %v614, %v613
      %v637 = vpack.c.b16 %v616, %v615
      %v638 = vpack.c.b16 %v618, %v617
      %v639 = vpack.c.b16 %v620, %v619
      %v640 = vpack.c.b16 %v622, %v621
      %v641 = vpack.c.b16 %v624, %v623
      %v642 = vpack.c.b16 %v626, %v625
      %659 = vmatprep.subr.bf16.mxu0 0
      %660 = vmatpush1.bf16.msra.mxu0 %v354
      %661 = vmatprep.subr.bf16.mxu0 0
      %662 = vmatpush1.bf16.msra.mxu0 %v355
      %663 = vmatprep.subr.bf16.mxu0 0
      %664 = vmatpush1.bf16.msra.mxu0 %v356
      %665 = vmatprep.subr.bf16.mxu0 0
      %666 = vmatpush1.bf16.msra.mxu0 %v357
      %667 = vmatprep.subr.bf16.mxu0 0
      %668 = vmatpush1.bf16.msra.mxu0 %v358
      %669 = vmatprep.subr.bf16.mxu0 0
      %670 = vmatpush1.bf16.msra.mxu0 %v359
      %671 = vmatprep.subr.bf16.mxu0 0
      %672 = vmatpush1.bf16.msra.mxu0 %v360
      %673 = vmatprep.subr.bf16.mxu0 0
      %674 = vmatpush1.bf16.msra.mxu0 %v361
      %675 = vmatprep.subr.bf16.mxu0 0
      %676 = vmatpush1.bf16.msra.mxu0 0
      %677 = vmatprep.subr.bf16.mxu0 0
      %678 = vmatpush1.bf16.msra.mxu0 0
      %679 = vmatprep.subr.bf16.mxu0 0
      %680 = vmatpush1.bf16.msra.mxu0 0
      %681 = vmatprep.subr.bf16.mxu0 0
      %682 = vmatpush1.bf16.msra.mxu0 0
      %683 = vmatprep.subr.bf16.mxu0 0
      %684 = vmatpush1.bf16.msra.mxu0 0
      %685 = vmatprep.subr.bf16.mxu0 0
      %686 = vmatpush1.bf16.msra.mxu0 0
      %687 = vmatprep.subr.bf16.mxu0 0
      %688 = vmatpush1.bf16.msra.mxu0 0
      %689 = vmatprep.subr.bf16.mxu0 0
      %690 = vmatpush1.bf16.msra.mxu0 0
      %691 = vmatprep.mubr.bf16.mxu0 0
      %692 = vmatmul.mubr.bf16.gmra.mrb[0].mxu0 %v627
      %v693 = vpop.f32.mrb[0].mxu0
      %v694 = vadd.f32 0.0, %v693
      %v695 = vpop.f32.mrb[0].mxu0
      %v696 = vpop.f32.mrb[0].mxu0
      %v697 = vadd.f32 0.0, %v696
      %v698 = vpop.f32.mrb[0].mxu0
      %699 = vmatprep.mubr.bf16.mxu0 0
      %700 = vmatmul.mubr.bf16.gmra.mrb[0].mxu0 %v628
      %v701 = vpop.f32.mrb[0].mxu0
      %v702 = vadd.f32 0.0, %v701
      %v703 = vpop.f32.mrb[0].mxu0
      %v704 = vpop.f32.mrb[0].mxu0
      %v705 = vadd.f32 0.0, %v704
      %v706 = vpop.f32.mrb[0].mxu0
      %707 = vmatprep.mubr.bf16.mxu0 0
      %708 = vmatmul.mubr.bf16.gmra.mrb[0].mxu0 %v629
      %v709 = vpop.f32.mrb[0].mxu0
      %v710 = vadd.f32 0.0, %v709
      %v711 = vpop.f32.mrb[0].mxu0
      %v712 = vpop.f32.mrb[0].mxu0
      %v713 = vadd.f32 0.0, %v712
      %v714 = vpop.f32.mrb[0].mxu0
      %715 = vmatprep.mubr.bf16.mxu0 0
      %716 = vmatmul.mubr.bf16.gmra.mrb[0].mxu0 %v630
      %v717 = vpop.f32.mrb[0].mxu0
      %v718 = vadd.f32 0.0, %v717
      %v719 = vpop.f32.mrb[0].mxu0
      %v720 = vpop.f32.mrb[0].mxu0
      %v721 = vadd.f32 0.0, %v720
      %v722 = vpop.f32.mrb[0].mxu0
      %723 = vmatprep.mubr.bf16.mxu0 0
      %724 = vmatmul.mubr.bf16.gmra.mrb[0].mxu0 %v631
      %v725 = vpop.f32.mrb[0].mxu0
      %v726 = vadd.f32 0.0, %v725
      %v727 = vpop.f32.mrb[0].mxu0
      %v728 = vpop.f32.mrb[0].mxu0
      %v729 = vadd.f32 0.0, %v728
      %v730 = vpop.f32.mrb[0].mxu0
      %731 = vmatprep.mubr.bf16.mxu0 0
      %732 = vmatmul.mubr.bf16.gmra.mrb[0].mxu0 %v632
      %v733 = vpop.f32.mrb[0].mxu0
      %v734 = vadd.f32 0.0, %v733
      %v735 = vpop.f32.mrb[0].mxu0
      %v736 = vpop.f32.mrb[0].mxu0
      %v737 = vadd.f32 0.0, %v736
      %v738 = vpop.f32.mrb[0].mxu0
      %739 = vmatprep.mubr.bf16.mxu0 0
      %740 = vmatmul.mubr.bf16.gmra.mrb[0].mxu0 %v633
      %v741 = vpop.f32.mrb[0].mxu0
      %v742 = vadd.f32 0.0, %v741
      %v743 = vpop.f32.mrb[0].mxu0
      %v744 = vpop.f32.mrb[0].mxu0
      %v745 = vadd.f32 0.0, %v744
      %v746 = vpop.f32.mrb[0].mxu0
      %747 = vmatprep.mubr.bf16.mxu0 0
      %748 = vmatmul.mubr.bf16.gmra.mrb[0].mxu0 %v634
      %v749 = vpop.f32.mrb[0].mxu0
      %v750 = vadd.f32 0.0, %v749
      %v751 = vpop.f32.mrb[0].mxu0
      %v752 = vpop.f32.mrb[0].mxu0
      %v753 = vadd.f32 0.0, %v752
      %v754 = vpop.f32.mrb[0].mxu0
      %755 = vmatprep.mubr.bf16.mxu0 0
      %756 = vmatmul.mubr.bf16.gmra.mrb[0].mxu0 %v635
      %v757 = vpop.f32.mrb[0].mxu0
      %v758 = vadd.f32 0.0, %v757
      %v759 = vpop.f32.mrb[0].mxu0
      %v760 = vpop.f32.mrb[0].mxu0
      %v761 = vadd.f32 0.0, %v760
      %v762 = vpop.f32.mrb[0].mxu0
      %763 = vmatprep.mubr.bf16.mxu0 0
      %764 = vmatmul.mubr.bf16.gmra.mrb[0].mxu0 %v636
      %v765 = vpop.f32.mrb[0].mxu0
      %v766 = vadd.f32 0.0, %v765
      %v767 = vpop.f32.mrb[0].mxu0
      %v768 = vpop.f32.mrb[0].mxu0
      %v769 = vadd.f32 0.0, %v768
      %v770 = vpop.f32.mrb[0].mxu0
      %771 = vmatprep.mubr.bf16.mxu0 0
      %772 = vmatmul.mubr.bf16.gmra.mrb[0].mxu0 %v637
      %v773 = vpop.f32.mrb[0].mxu0
      %v774 = vadd.f32 0.0, %v773
      %v775 = vpop.f32.mrb[0].mxu0
      %v776 = vpop.f32.mrb[0].mxu0
      %v777 = vadd.f32 0.0, %v776
      %v778 = vpop.f32.mrb[0].mxu0
      %779 = vmatprep.mubr.bf16.mxu0 0
      %780 = vmatmul.mubr.bf16.gmra.mrb[0].mxu0 %v638
      %v781 = vpop.f32.mrb[0].mxu0
      %v782 = vadd.f32 0.0, %v781
      %v783 = vpop.f32.mrb[0].mxu0
      %v784 = vpop.f32.mrb[0].mxu0
      %v785 = vadd.f32 0.0, %v784
      %v786 = vpop.f32.mrb[0].mxu0
      %787 = vmatprep.mubr.bf16.mxu0 0
      %788 = vmatmul.mubr.bf16.gmra.mrb[0].mxu0 %v639
      %v789 = vpop.f32.mrb[0].mxu0
      %v790 = vadd.f32 0.0, %v789
      %v791 = vpop.f32.mrb[0].mxu0
      %v792 = vpop.f32.mrb[0].mxu0
      %v793 = vadd.f32 0.0, %v792
      %v794 = vpop.f32.mrb[0].mxu0
      %795 = vmatprep.mubr.bf16.mxu0 0
      %796 = vmatmul.mubr.bf16.gmra.mrb[0].mxu0 %v640
      %v797 = vpop.f32.mrb[0].mxu0
      %v798 = vadd.f32 0.0, %v797
      %v799 = vpop.f32.mrb[0].mxu0
      %v800 = vpop.f32.mrb[0].mxu0
      %v801 = vadd.f32 0.0, %v800
      %v802 = vpop.f32.mrb[0].mxu0
      %803 = vmatprep.mubr.bf16.mxu0 0
      %804 = vmatmul.mubr.bf16.gmra.mrb[0].mxu0 %v641
      %v805 = vpop.f32.mrb[0].mxu0
      %v806 = vadd.f32 0.0, %v805
      %v807 = vpop.f32.mrb[0].mxu0
      %v808 = vpop.f32.mrb[0].mxu0
      %v809 = vadd.f32 0.0, %v808
      %v810 = vpop.f32.mrb[0].mxu0
      %811 = vmatprep.mubr.bf16.mxu0 0
      %812 = vmatmul.mubr.bf16.gmra.mrb[0].mxu0 %v642
      %v813 = vpop.f32.mrb[0].mxu0
      %v814 = vadd.f32 0.0, %v813
      %v815 = vpop.f32.mrb[0].mxu0
      %v816 = vpop.f32.mrb[0].mxu0
      %v817 = vadd.f32 0.0, %v816
      %v818 = vpop.f32.mrb[0].mxu0
      %819 = vdwg.mxu0
      %v820 = vmax.f32 %v405, %v694
      %v821 = vmax.f32 %v408, %v697
      %v822 = vmax.f32 %v413, %v702
      %v823 = vmax.f32 %v416, %v705
      %v824 = vmax.f32 %v421, %v710
      %v825 = vmax.f32 %v424, %v713
      %v826 = vmax.f32 %v429, %v718
      %v827 = vmax.f32 %v432, %v721
      %v828 = vmax.f32 %v437, %v726
      %v829 = vmax.f32 %v440, %v729
      %v830 = vmax.f32 %v445, %v734
      %v831 = vmax.f32 %v448, %v737
      %v832 = vmax.f32 %v453, %v742
      %v833 = vmax.f32 %v456, %v745
      %v834 = vmax.f32 %v461, %v750
      %v835 = vmax.f32 %v464, %v753
      %v836 = vmax.f32 %v469, %v758
      %v837 = vmax.f32 %v472, %v761
      %v838 = vmax.f32 %v477, %v766
      %v839 = vmax.f32 %v480, %v769
      %v840 = vmax.f32 %v485, %v774
      %v841 = vmax.f32 %v488, %v777
      %v842 = vmax.f32 %v493, %v782
      %v843 = vmax.f32 %v496, %v785
      %v844 = vmax.f32 %v501, %v790
      %v845 = vmax.f32 %v504, %v793
      %v846 = vmax.f32 %v509, %v798
      %v847 = vmax.f32 %v512, %v801
      %v848 = vmax.f32 %v517, %v806
      %v849 = vmax.f32 %v520, %v809
      %v850 = vmax.f32 %v525, %v814
      %v851 = vmax.f32 %v528, %v817
      %v852 = vld [vmem:[%s169 + $0x8] sm:$0xf]
      %v853 = vld [vmem:[%s169 + $0x18] sm:$0xf]
      %v854 = vld [vmem:[%s169 + $0x28] sm:$0xf]
      %v855 = vld [vmem:[%s169 + $0x38] sm:$0xf]
      %v856 = vld [vmem:[%s169 + $0x48] sm:$0xf]
      %v857 = vld [vmem:[%s169 + $0x58] sm:$0xf]
      %v858 = vld [vmem:[%s169 + $0x68] sm:$0xf]
      %v859 = vld [vmem:[%s169 + $0x78] sm:$0xf]
      %v860 = vld [vmem:[%s169 + $0x88] sm:$0xf]
      %v861 = vld [vmem:[%s169 + $0x98] sm:$0xf]
      %v862 = vld [vmem:[%s169 + $0xa8] sm:$0xf]
      %v863 = vld [vmem:[%s169 + $0xb8] sm:$0xf]
      %v864 = vld [vmem:[%s169 + $0xc8] sm:$0xf]
      %v865 = vld [vmem:[%s169 + $0xd8] sm:$0xf]
      %v866 = vld [vmem:[%s169 + $0xe8] sm:$0xf]
      %v867 = vld [vmem:[%s169 + $0xf8] sm:$0xf]
      %v868 = vld [vmem:[%s169 + $0x108] sm:$0xf]
      %v869 = vld [vmem:[%s169 + $0x118] sm:$0xf]
      %v870 = vld [vmem:[%s169 + $0x128] sm:$0xf]
      %v871 = vld [vmem:[%s169 + $0x138] sm:$0xf]
      %v872 = vld [vmem:[%s169 + $0x148] sm:$0xf]
      %v873 = vld [vmem:[%s169 + $0x158] sm:$0xf]
      %v874 = vld [vmem:[%s169 + $0x168] sm:$0xf]
      %v875 = vld [vmem:[%s169 + $0x178] sm:$0xf]
      %v876 = vld [vmem:[%s169 + $0x188] sm:$0xf]
      %v877 = vld [vmem:[%s169 + $0x198] sm:$0xf]
      %v878 = vld [vmem:[%s169 + $0x1a8] sm:$0xf]
      %v879 = vld [vmem:[%s169 + $0x1b8] sm:$0xf]
      %v880 = vld [vmem:[%s169 + $0x1c8] sm:$0xf]
      %v881 = vld [vmem:[%s169 + $0x1d8] sm:$0xf]
      %v882 = vld [vmem:[%s169 + $0x1e8] sm:$0xf]
      %v883 = vld [vmem:[%s169 + $0x1f8] sm:$0xf]
      %v916 = vunpack.c.l.b16 %v852
      %v917 = vunpack.c.l.b16 %v853
      %v918 = vunpack.c.l.b16 %v854
      %v919 = vunpack.c.l.b16 %v855
      %v920 = vunpack.c.l.b16 %v856
      %v921 = vunpack.c.l.b16 %v857
      %v922 = vunpack.c.l.b16 %v858
      %v923 = vunpack.c.l.b16 %v859
      %v924 = vunpack.c.l.b16 %v860
      %v925 = vunpack.c.l.b16 %v861
      %v926 = vunpack.c.l.b16 %v862
      %v927 = vunpack.c.l.b16 %v863
      %v928 = vunpack.c.l.b16 %v864
      %v929 = vunpack.c.l.b16 %v865
      %v930 = vunpack.c.l.b16 %v866
      %v931 = vunpack.c.l.b16 %v867
      %v932 = vunpack.c.l.b16 %v868
      %v933 = vunpack.c.l.b16 %v869
      %v934 = vunpack.c.l.b16 %v870
      %v935 = vunpack.c.l.b16 %v871
      %v936 = vunpack.c.l.b16 %v872
      %v937 = vunpack.c.l.b16 %v873
      %v938 = vunpack.c.l.b16 %v874
      %v939 = vunpack.c.l.b16 %v875
      %v940 = vunpack.c.l.b16 %v876
      %v941 = vunpack.c.l.b16 %v877
      %v942 = vunpack.c.l.b16 %v878
      %v943 = vunpack.c.l.b16 %v879
      %v944 = vunpack.c.l.b16 %v880
      %v945 = vunpack.c.l.b16 %v881
      %v946 = vunpack.c.l.b16 %v882
      %v947 = vunpack.c.l.b16 %v883
      %v948 = vpack.c.b16 %v917, %v916
      %v949 = vpack.c.b16 %v919, %v918
      %v950 = vpack.c.b16 %v921, %v920
      %v951 = vpack.c.b16 %v923, %v922
      %v952 = vpack.c.b16 %v925, %v924
      %v953 = vpack.c.b16 %v927, %v926
      %v954 = vpack.c.b16 %v929, %v928
      %v955 = vpack.c.b16 %v931, %v930
      %v956 = vpack.c.b16 %v933, %v932
      %v957 = vpack.c.b16 %v935, %v934
      %v958 = vpack.c.b16 %v937, %v936
      %v959 = vpack.c.b16 %v939, %v938
      %v960 = vpack.c.b16 %v941, %v940
      %v961 = vpack.c.b16 %v943, %v942
      %v962 = vpack.c.b16 %v945, %v944
      %v963 = vpack.c.b16 %v947, %v946
      %980 = vmatprep.subr.bf16.mxu0 0
      %981 = vmatpush1.bf16.msra.mxu0 %v354
      %982 = vmatprep.subr.bf16.mxu0 0
      %983 = vmatpush1.bf16.msra.mxu0 %v355
      %984 = vmatprep.subr.bf16.mxu0 0
      %985 = vmatpush1.bf16.msra.mxu0 %v356
      %986 = vmatprep.subr.bf16.mxu0 0
      %987 = vmatpush1.bf16.msra.mxu0 %v357
      %988 = vmatprep.subr.bf16.mxu0 0
      %989 = vmatpush1.bf16.msra.mxu0 %v358
      %990 = vmatprep.subr.bf16.mxu0 0
      %991 = vmatpush1.bf16.msra.mxu0 %v359
      %992 = vmatprep.subr.bf16.mxu0 0
      %993 = vmatpush1.bf16.msra.mxu0 %v360
      %994 = vmatprep.subr.bf16.mxu0 0
      %995 = vmatpush1.bf16.msra.mxu0 %v361
      %996 = vmatprep.subr.bf16.mxu0 0
      %997 = vmatpush1.bf16.msra.mxu0 0
      %998 = vmatprep.subr.bf16.mxu0 0
      %999 = vmatpush1.bf16.msra.mxu0 0
      %1000 = vmatprep.subr.bf16.mxu0 0
      %1001 = vmatpush1.bf16.msra.mxu0 0
      %1002 = vmatprep.subr.bf16.mxu0 0
      %1003 = vmatpush1.bf16.msra.mxu0 0
      %1004 = vmatprep.subr.bf16.mxu0 0
      %1005 = vmatpush1.bf16.msra.mxu0 0
      %1006 = vmatprep.subr.bf16.mxu0 0
      %1007 = vmatpush1.bf16.msra.mxu0 0
      %1008 = vmatprep.subr.bf16.mxu0 0
      %1009 = vmatpush1.bf16.msra.mxu0 0
      %1010 = vmatprep.subr.bf16.mxu0 0
      %1011 = vmatpush1.bf16.msra.mxu0 0
      %1012 = vmatprep.mubr.bf16.mxu0 0
      %1013 = vmatmul.mubr.bf16.gmra.mrb[0].mxu0 %v948
      %v1014 = vpop.f32.mrb[0].mxu0
      %v1015 = vadd.f32 0.0, %v1014
      %v1016 = vpop.f32.mrb[0].mxu0
      %v1017 = vpop.f32.mrb[0].mxu0
      %v1018 = vadd.f32 0.0, %v1017
      %v1019 = vpop.f32.mrb[0].mxu0
      %1020 = vmatprep.mubr.bf16.mxu0 0
      %1021 = vmatmul.mubr.bf16.gmra.mrb[0].mxu0 %v949
      %v1022 = vpop.f32.mrb[0].mxu0
      %v1023 = vadd.f32 0.0, %v1022
      %v1024 = vpop.f32.mrb[0].mxu0
      %v1025 = vpop.f32.mrb[0].mxu0
      %v1026 = vadd.f32 0.0, %v1025
      %v1027 = vpop.f32.mrb[0].mxu0
      %1028 = vmatprep.mubr.bf16.mxu0 0
      %1029 = vmatmul.mubr.bf16.gmra.mrb[0].mxu0 %v950
      %v1030 = vpop.f32.mrb[0].mxu0
      %v1031 = vadd.f32 0.0, %v1030
      %v1032 = vpop.f32.mrb[0].mxu0
      %v1033 = vpop.f32.mrb[0].mxu0
      %v1034 = vadd.f32 0.0, %v1033
      %v1035 = vpop.f32.mrb[0].mxu0
      %1036 = vmatprep.mubr.bf16.mxu0 0
      %1037 = vmatmul.mubr.bf16.gmra.mrb[0].mxu0 %v951
      %v1038 = vpop.f32.mrb[0].mxu0
      %v1039 = vadd.f32 0.0, %v1038
      %v1040 = vpop.f32.mrb[0].mxu0
      %v1041 = vpop.f32.mrb[0].mxu0
      %v1042 = vadd.f32 0.0, %v1041
      %v1043 = vpop.f32.mrb[0].mxu0
      %1044 = vmatprep.mubr.bf16.mxu0 0
      %1045 = vmatmul.mubr.bf16.gmra.mrb[0].mxu0 %v952
      %v1046 = vpop.f32.mrb[0].mxu0
      %v1047 = vadd.f32 0.0, %v1046
      %v1048 = vpop.f32.mrb[0].mxu0
      %v1049 = vpop.f32.mrb[0].mxu0
      %v1050 = vadd.f32 0.0, %v1049
      %v1051 = vpop.f32.mrb[0].mxu0
      %1052 = vmatprep.mubr.bf16.mxu0 0
      %1053 = vmatmul.mubr.bf16.gmra.mrb[0].mxu0 %v953
      %v1054 = vpop.f32.mrb[0].mxu0
      %v1055 = vadd.f32 0.0, %v1054
      %v1056 = vpop.f32.mrb[0].mxu0
      %v1057 = vpop.f32.mrb[0].mxu0
      %v1058 = vadd.f32 0.0, %v1057
      %v1059 = vpop.f32.mrb[0].mxu0
      %1060 = vmatprep.mubr.bf16.mxu0 0
      %1061 = vmatmul.mubr.bf16.gmra.mrb[0].mxu0 %v954
      %v1062 = vpop.f32.mrb[0].mxu0
      %v1063 = vadd.f32 0.0, %v1062
      %v1064 = vpop.f32.mrb[0].mxu0
      %v1065 = vpop.f32.mrb[0].mxu0
      %v1066 = vadd.f32 0.0, %v1065
      %v1067 = vpop.f32.mrb[0].mxu0
      %1068 = vmatprep.mubr.bf16.mxu0 0
      %1069 = vmatmul.mubr.bf16.gmra.mrb[0].mxu0 %v955
      %v1070 = vpop.f32.mrb[0].mxu0
      %v1071 = vadd.f32 0.0, %v1070
      %v1072 = vpop.f32.mrb[0].mxu0
      %v1073 = vpop.f32.mrb[0].mxu0
      %v1074 = vadd.f32 0.0, %v1073
      %v1075 = vpop.f32.mrb[0].mxu0
      %1076 = vmatprep.mubr.bf16.mxu0 0
      %1077 = vmatmul.mubr.bf16.gmra.mrb[0].mxu0 %v956
      %v1078 = vpop.f32.mrb[0].mxu0
      %v1079 = vadd.f32 0.0, %v1078
      %v1080 = vpop.f32.mrb[0].mxu0
      %v1081 = vpop.f32.mrb[0].mxu0
      %v1082 = vadd.f32 0.0, %v1081
      %v1083 = vpop.f32.mrb[0].mxu0
      %1084 = vmatprep.mubr.bf16.mxu0 0
      %1085 = vmatmul.mubr.bf16.gmra.mrb[0].mxu0 %v957
      %v1086 = vpop.f32.mrb[0].mxu0
      %v1087 = vadd.f32 0.0, %v1086
      %v1088 = vpop.f32.mrb[0].mxu0
      %v1089 = vpop.f32.mrb[0].mxu0
      %v1090 = vadd.f32 0.0, %v1089
      %v1091 = vpop.f32.mrb[0].mxu0
      %1092 = vmatprep.mubr.bf16.mxu0 0
      %1093 = vmatmul.mubr.bf16.gmra.mrb[0].mxu0 %v958
      %v1094 = vpop.f32.mrb[0].mxu0
      %v1095 = vadd.f32 0.0, %v1094
      %v1096 = vpop.f32.mrb[0].mxu0
      %v1097 = vpop.f32.mrb[0].mxu0
      %v1098 = vadd.f32 0.0, %v1097
      %v1099 = vpop.f32.mrb[0].mxu0
      %1100 = vmatprep.mubr.bf16.mxu0 0
      %1101 = vmatmul.mubr.bf16.gmra.mrb[0].mxu0 %v959
      %v1102 = vpop.f32.mrb[0].mxu0
      %v1103 = vadd.f32 0.0, %v1102
      %v1104 = vpop.f32.mrb[0].mxu0
      %v1105 = vpop.f32.mrb[0].mxu0
      %v1106 = vadd.f32 0.0, %v1105
      %v1107 = vpop.f32.mrb[0].mxu0
      %1108 = vmatprep.mubr.bf16.mxu0 0
      %1109 = vmatmul.mubr.bf16.gmra.mrb[0].mxu0 %v960
      %v1110 = vpop.f32.mrb[0].mxu0
      %v1111 = vadd.f32 0.0, %v1110
      %v1112 = vpop.f32.mrb[0].mxu0
      %v1113 = vpop.f32.mrb[0].mxu0
      %v1114 = vadd.f32 0.0, %v1113
      %v1115 = vpop.f32.mrb[0].mxu0
      %1116 = vmatprep.mubr.bf16.mxu0 0
      %1117 = vmatmul.mubr.bf16.gmra.mrb[0].mxu0 %v961
      %v1118 = vpop.f32.mrb[0].mxu0
      %v1119 = vadd.f32 0.0, %v1118
      %v1120 = vpop.f32.mrb[0].mxu0
      %v1121 = vpop.f32.mrb[0].mxu0
      %v1122 = vadd.f32 0.0, %v1121
      %v1123 = vpop.f32.mrb[0].mxu0
      %1124 = vmatprep.mubr.bf16.mxu0 0
      %1125 = vmatmul.mubr.bf16.gmra.mrb[0].mxu0 %v962
      %v1126 = vpop.f32.mrb[0].mxu0
      %v1127 = vadd.f32 0.0, %v1126
      %v1128 = vpop.f32.mrb[0].mxu0
      %v1129 = vpop.f32.mrb[0].mxu0
      %v1130 = vadd.f32 0.0, %v1129
      %v1131 = vpop.f32.mrb[0].mxu0
      %1132 = vmatprep.mubr.bf16.mxu0 0
      %1133 = vmatmul.mubr.bf16.gmra.mrb[0].mxu0 %v963
      %v1134 = vpop.f32.mrb[0].mxu0
      %v1135 = vadd.f32 0.0, %v1134
      %v1136 = vpop.f32.mrb[0].mxu0
      %v1137 = vpop.f32.mrb[0].mxu0
      %v1138 = vadd.f32 0.0, %v1137
      %v1139 = vpop.f32.mrb[0].mxu0
      %1140 = vdwg.mxu0
      %v1141 = vmax.f32 %v820, %v1015
      %v1142 = vmax.f32 %v821, %v1018
      %v1143 = vmax.f32 %v822, %v1023
      %v1144 = vmax.f32 %v823, %v1026
      %v1145 = vmax.f32 %v824, %v1031
      %v1146 = vmax.f32 %v825, %v1034
      %v1147 = vmax.f32 %v826, %v1039
      %v1148 = vmax.f32 %v827, %v1042
      %v1149 = vmax.f32 %v828, %v1047
      %v1150 = vmax.f32 %v829, %v1050
      %v1151 = vmax.f32 %v830, %v1055
      %v1152 = vmax.f32 %v831, %v1058
      %v1153 = vmax.f32 %v832, %v1063
      %v1154 = vmax.f32 %v833, %v1066
      %v1155 = vmax.f32 %v834, %v1071
      %v1156 = vmax.f32 %v835, %v1074
      %v1157 = vmax.f32 %v836, %v1079
      %v1158 = vmax.f32 %v837, %v1082
      %v1159 = vmax.f32 %v838, %v1087
      %v1160 = vmax.f32 %v839, %v1090
      %v1161 = vmax.f32 %v840, %v1095
      %v1162 = vmax.f32 %v841, %v1098
      %v1163 = vmax.f32 %v842, %v1103
      %v1164 = vmax.f32 %v843, %v1106
      %v1165 = vmax.f32 %v844, %v1111
      %v1166 = vmax.f32 %v845, %v1114
      %v1167 = vmax.f32 %v846, %v1119
      %v1168 = vmax.f32 %v847, %v1122
      %v1169 = vmax.f32 %v848, %v1127
      %v1170 = vmax.f32 %v849, %v1130
      %v1171 = vmax.f32 %v850, %v1135
      %v1172 = vmax.f32 %v851, %v1138
      %v1173 = vld [vmem:[%s169 + $0xc] sm:$0xf]
      %v1174 = vld [vmem:[%s169 + $0x1c] sm:$0xf]
      %v1175 = vld [vmem:[%s169 + $0x2c] sm:$0xf]
      %v1176 = vld [vmem:[%s169 + $0x3c] sm:$0xf]
      %v1177 = vld [vmem:[%s169 + $0x4c] sm:$0xf]
      %v1178 = vld [vmem:[%s169 + $0x5c] sm:$0xf]
      %v1179 = vld [vmem:[%s169 + $0x6c] sm:$0xf]
      %v1180 = vld [vmem:[%s169 + $0x7c] sm:$0xf]
      %v1181 = vld [vmem:[%s169 + $0x8c] sm:$0xf]
      %v1182 = vld [vmem:[%s169 + $0x9c] sm:$0xf]
      %v1183 = vld [vmem:[%s169 + $0xac] sm:$0xf]
      %v1184 = vld [vmem:[%s169 + $0xbc] sm:$0xf]
      %v1185 = vld [vmem:[%s169 + $0xcc] sm:$0xf]
      %v1186 = vld [vmem:[%s169 + $0xdc] sm:$0xf]
      %v1187 = vld [vmem:[%s169 + $0xec] sm:$0xf]
      %v1188 = vld [vmem:[%s169 + $0xfc] sm:$0xf]
      %v1189 = vld [vmem:[%s169 + $0x10c] sm:$0xf]
      %v1190 = vld [vmem:[%s169 + $0x11c] sm:$0xf]
      %v1191 = vld [vmem:[%s169 + $0x12c] sm:$0xf]
      %v1192 = vld [vmem:[%s169 + $0x13c] sm:$0xf]
      %v1193 = vld [vmem:[%s169 + $0x14c] sm:$0xf]
      %v1194 = vld [vmem:[%s169 + $0x15c] sm:$0xf]
      %v1195 = vld [vmem:[%s169 + $0x16c] sm:$0xf]
      %v1196 = vld [vmem:[%s169 + $0x17c] sm:$0xf]
      %v1197 = vld [vmem:[%s169 + $0x18c] sm:$0xf]
      %v1198 = vld [vmem:[%s169 + $0x19c] sm:$0xf]
      %v1199 = vld [vmem:[%s169 + $0x1ac] sm:$0xf]
      %v1200 = vld [vmem:[%s169 + $0x1bc] sm:$0xf]
      %v1201 = vld [vmem:[%s169 + $0x1cc] sm:$0xf]
      %v1202 = vld [vmem:[%s169 + $0x1dc] sm:$0xf]
      %v1203 = vld [vmem:[%s169 + $0x1ec] sm:$0xf]
      %v1204 = vld [vmem:[%s169 + $0x1fc] sm:$0xf]
      %v1237 = vunpack.c.l.b16 %v1173
      %v1238 = vunpack.c.l.b16 %v1174
      %v1239 = vunpack.c.l.b16 %v1175
      %v1240 = vunpack.c.l.b16 %v1176
      %v1241 = vunpack.c.l.b16 %v1177
      %v1242 = vunpack.c.l.b16 %v1178
      %v1243 = vunpack.c.l.b16 %v1179
      %v1244 = vunpack.c.l.b16 %v1180
      %v1245 = vunpack.c.l.b16 %v1181
      %v1246 = vunpack.c.l.b16 %v1182
      %v1247 = vunpack.c.l.b16 %v1183
      %v1248 = vunpack.c.l.b16 %v1184
      %v1249 = vunpack.c.l.b16 %v1185
      %v1250 = vunpack.c.l.b16 %v1186
      %v1251 = vunpack.c.l.b16 %v1187
      %v1252 = vunpack.c.l.b16 %v1188
      %v1253 = vunpack.c.l.b16 %v1189
      %v1254 = vunpack.c.l.b16 %v1190
      %v1255 = vunpack.c.l.b16 %v1191
      %v1256 = vunpack.c.l.b16 %v1192
      %v1257 = vunpack.c.l.b16 %v1193
      %v1258 = vunpack.c.l.b16 %v1194
      %v1259 = vunpack.c.l.b16 %v1195
      %v1260 = vunpack.c.l.b16 %v1196
      %v1261 = vunpack.c.l.b16 %v1197
      %v1262 = vunpack.c.l.b16 %v1198
      %v1263 = vunpack.c.l.b16 %v1199
      %v1264 = vunpack.c.l.b16 %v1200
      %v1265 = vunpack.c.l.b16 %v1201
      %v1266 = vunpack.c.l.b16 %v1202
      %v1267 = vunpack.c.l.b16 %v1203
      %v1268 = vunpack.c.l.b16 %v1204
      %v1269 = vpack.c.b16 %v1238, %v1237
      %v1270 = vpack.c.b16 %v1240, %v1239
      %v1271 = vpack.c.b16 %v1242, %v1241
      %v1272 = vpack.c.b16 %v1244, %v1243
      %v1273 = vpack.c.b16 %v1246, %v1245
      %v1274 = vpack.c.b16 %v1248, %v1247
      %v1275 = vpack.c.b16 %v1250, %v1249
      %v1276 = vpack.c.b16 %v1252, %v1251
      %v1277 = vpack.c.b16 %v1254, %v1253
      %v1278 = vpack.c.b16 %v1256, %v1255
      %v1279 = vpack.c.b16 %v1258, %v1257
      %v1280 = vpack.c.b16 %v1260, %v1259
      %v1281 = vpack.c.b16 %v1262, %v1261
      %v1282 = vpack.c.b16 %v1264, %v1263
      %v1283 = vpack.c.b16 %v1266, %v1265
      %v1284 = vpack.c.b16 %v1268, %v1267
      %1301 = vmatprep.subr.bf16.mxu0 0
      %1302 = vmatpush1.bf16.msra.mxu0 %v354
      %1303 = vmatprep.subr.bf16.mxu0 0
      %1304 = vmatpush1.bf16.msra.mxu0 %v355
      %1305 = vmatprep.subr.bf16.mxu0 0
      %1306 = vmatpush1.bf16.msra.mxu0 %v356
      %1307 = vmatprep.subr.bf16.mxu0 0
      %1308 = vmatpush1.bf16.msra.mxu0 %v357
      %1309 = vmatprep.subr.bf16.mxu0 0
      %1310 = vmatpush1.bf16.msra.mxu0 %v358
      %1311 = vmatprep.subr.bf16.mxu0 0
      %1312 = vmatpush1.bf16.msra.mxu0 %v359
      %1313 = vmatprep.subr.bf16.mxu0 0
      %1314 = vmatpush1.bf16.msra.mxu0 %v360
      %1315 = vmatprep.subr.bf16.mxu0 0
      %1316 = vmatpush1.bf16.msra.mxu0 %v361
      %1317 = vmatprep.subr.bf16.mxu0 0
      %1318 = vmatpush1.bf16.msra.mxu0 0
      %1319 = vmatprep.subr.bf16.mxu0 0
      %1320 = vmatpush1.bf16.msra.mxu0 0
      %1321 = vmatprep.subr.bf16.mxu0 0
      %1322 = vmatpush1.bf16.msra.mxu0 0
      %1323 = vmatprep.subr.bf16.mxu0 0
      %1324 = vmatpush1.bf16.msra.mxu0 0
      %1325 = vmatprep.subr.bf16.mxu0 0
      %1326 = vmatpush1.bf16.msra.mxu0 0
      %1327 = vmatprep.subr.bf16.mxu0 0
      %1328 = vmatpush1.bf16.msra.mxu0 0
      %1329 = vmatprep.subr.bf16.mxu0 0
      %1330 = vmatpush1.bf16.msra.mxu0 0
      %1331 = vmatprep.subr.bf16.mxu0 0
      %1332 = vmatpush1.bf16.msra.mxu0 0
      %1333 = vmatprep.mubr.bf16.mxu0 0
      %1334 = vmatmul.mubr.bf16.gmra.mrb[0].mxu0 %v1269
      %v1335 = vpop.f32.mrb[0].mxu0
      %v1336 = vadd.f32 0.0, %v1335
      %v1337 = vpop.f32.mrb[0].mxu0
      %v1338 = vpop.f32.mrb[0].mxu0
      %v1339 = vadd.f32 0.0, %v1338
      %v1340 = vpop.f32.mrb[0].mxu0
      %1341 = vmatprep.mubr.bf16.mxu0 0
      %1342 = vmatmul.mubr.bf16.gmra.mrb[0].mxu0 %v1270
      %v1343 = vpop.f32.mrb[0].mxu0
      %v1344 = vadd.f32 0.0, %v1343
      %v1345 = vpop.f32.mrb[0].mxu0
      %v1346 = vpop.f32.mrb[0].mxu0
      %v1347 = vadd.f32 0.0, %v1346
      %v1348 = vpop.f32.mrb[0].mxu0
      %1349 = vmatprep.mubr.bf16.mxu0 0
      %1350 = vmatmul.mubr.bf16.gmra.mrb[0].mxu0 %v1271
      %v1351 = vpop.f32.mrb[0].mxu0
      %v1352 = vadd.f32 0.0, %v1351
      %v1353 = vpop.f32.mrb[0].mxu0
      %v1354 = vpop.f32.mrb[0].mxu0
      %v1355 = vadd.f32 0.0, %v1354
      %v1356 = vpop.f32.mrb[0].mxu0
      %1357 = vmatprep.mubr.bf16.mxu0 0
      %1358 = vmatmul.mubr.bf16.gmra.mrb[0].mxu0 %v1272
      %v1359 = vpop.f32.mrb[0].mxu0
      %v1360 = vadd.f32 0.0, %v1359
      %v1361 = vpop.f32.mrb[0].mxu0
      %v1362 = vpop.f32.mrb[0].mxu0
      %v1363 = vadd.f32 0.0, %v1362
      %v1364 = vpop.f32.mrb[0].mxu0
      %1365 = vmatprep.mubr.bf16.mxu0 0
      %1366 = vmatmul.mubr.bf16.gmra.mrb[0].mxu0 %v1273
      %v1367 = vpop.f32.mrb[0].mxu0
      %v1368 = vadd.f32 0.0, %v1367
      %v1369 = vpop.f32.mrb[0].mxu0
      %v1370 = vpop.f32.mrb[0].mxu0
      %v1371 = vadd.f32 0.0, %v1370
      %v1372 = vpop.f32.mrb[0].mxu0
      %1373 = vmatprep.mubr.bf16.mxu0 0
      %1374 = vmatmul.mubr.bf16.gmra.mrb[0].mxu0 %v1274
      %v1375 = vpop.f32.mrb[0].mxu0
      %v1376 = vadd.f32 0.0, %v1375
      %v1377 = vpop.f32.mrb[0].mxu0
      %v1378 = vpop.f32.mrb[0].mxu0
      %v1379 = vadd.f32 0.0, %v1378
      %v1380 = vpop.f32.mrb[0].mxu0
      %1381 = vmatprep.mubr.bf16.mxu0 0
      %1382 = vmatmul.mubr.bf16.gmra.mrb[0].mxu0 %v1275
      %v1383 = vpop.f32.mrb[0].mxu0
      %v1384 = vadd.f32 0.0, %v1383
      %v1385 = vpop.f32.mrb[0].mxu0
      %v1386 = vpop.f32.mrb[0].mxu0
      %v1387 = vadd.f32 0.0, %v1386
      %v1388 = vpop.f32.mrb[0].mxu0
      %1389 = vmatprep.mubr.bf16.mxu0 0
      %1390 = vmatmul.mubr.bf16.gmra.mrb[0].mxu0 %v1276
      %v1391 = vpop.f32.mrb[0].mxu0
      %v1392 = vadd.f32 0.0, %v1391
      %v1393 = vpop.f32.mrb[0].mxu0
      %v1394 = vpop.f32.mrb[0].mxu0
      %v1395 = vadd.f32 0.0, %v1394
      %v1396 = vpop.f32.mrb[0].mxu0
      %1397 = vmatprep.mubr.bf16.mxu0 0
      %1398 = vmatmul.mubr.bf16.gmra.mrb[0].mxu0 %v1277
      %v1399 = vpop.f32.mrb[0].mxu0
      %v1400 = vadd.f32 0.0, %v1399
      %v1401 = vpop.f32.mrb[0].mxu0
      %v1402 = vpop.f32.mrb[0].mxu0
      %v1403 = vadd.f32 0.0, %v1402
      %v1404 = vpop.f32.mrb[0].mxu0
      %1405 = vmatprep.mubr.bf16.mxu0 0
      %1406 = vmatmul.mubr.bf16.gmra.mrb[0].mxu0 %v1278
      %v1407 = vpop.f32.mrb[0].mxu0
      %v1408 = vadd.f32 0.0, %v1407
      %v1409 = vpop.f32.mrb[0].mxu0
      %v1410 = vpop.f32.mrb[0].mxu0
      %v1411 = vadd.f32 0.0, %v1410
      %v1412 = vpop.f32.mrb[0].mxu0
      %1413 = vmatprep.mubr.bf16.mxu0 0
      %1414 = vmatmul.mubr.bf16.gmra.mrb[0].mxu0 %v1279
      %v1415 = vpop.f32.mrb[0].mxu0
      %v1416 = vadd.f32 0.0, %v1415
      %v1417 = vpop.f32.mrb[0].mxu0
      %v1418 = vpop.f32.mrb[0].mxu0
      %v1419 = vadd.f32 0.0, %v1418
      %v1420 = vpop.f32.mrb[0].mxu0
      %1421 = vmatprep.mubr.bf16.mxu0 0
      %1422 = vmatmul.mubr.bf16.gmra.mrb[0].mxu0 %v1280
      %v1423 = vpop.f32.mrb[0].mxu0
      %v1424 = vadd.f32 0.0, %v1423
      %v1425 = vpop.f32.mrb[0].mxu0
      %v1426 = vpop.f32.mrb[0].mxu0
      %v1427 = vadd.f32 0.0, %v1426
      %v1428 = vpop.f32.mrb[0].mxu0
      %1429 = vmatprep.mubr.bf16.mxu0 0
      %1430 = vmatmul.mubr.bf16.gmra.mrb[0].mxu0 %v1281
      %v1431 = vpop.f32.mrb[0].mxu0
      %v1432 = vadd.f32 0.0, %v1431
      %v1433 = vpop.f32.mrb[0].mxu0
      %v1434 = vpop.f32.mrb[0].mxu0
      %v1435 = vadd.f32 0.0, %v1434
      %v1436 = vpop.f32.mrb[0].mxu0
      %1437 = vmatprep.mubr.bf16.mxu0 0
      %1438 = vmatmul.mubr.bf16.gmra.mrb[0].mxu0 %v1282
      %v1439 = vpop.f32.mrb[0].mxu0
      %v1440 = vadd.f32 0.0, %v1439
      %v1441 = vpop.f32.mrb[0].mxu0
      %v1442 = vpop.f32.mrb[0].mxu0
      %v1443 = vadd.f32 0.0, %v1442
      %v1444 = vpop.f32.mrb[0].mxu0
      %1445 = vmatprep.mubr.bf16.mxu0 0
      %1446 = vmatmul.mubr.bf16.gmra.mrb[0].mxu0 %v1283
      %v1447 = vpop.f32.mrb[0].mxu0
      %v1448 = vadd.f32 0.0, %v1447
      %v1449 = vpop.f32.mrb[0].mxu0
      %v1450 = vpop.f32.mrb[0].mxu0
      %v1451 = vadd.f32 0.0, %v1450
      %v1452 = vpop.f32.mrb[0].mxu0
      %1453 = vmatprep.mubr.bf16.mxu0 0
      %1454 = vmatmul.mubr.bf16.gmra.mrb[0].mxu0 %v1284
      %v1455 = vpop.f32.mrb[0].mxu0
      %v1456 = vadd.f32 0.0, %v1455
      %v1457 = vpop.f32.mrb[0].mxu0
      %v1458 = vpop.f32.mrb[0].mxu0
      %v1459 = vadd.f32 0.0, %v1458
      %v1460 = vpop.f32.mrb[0].mxu0
      %1461 = vdwg.mxu0
      %v1462 = vmax.f32 %v1141, %v1336
      %v1463 = vmax.f32 %v1142, %v1339
      %v1464 = vmax.f32 %v1143, %v1344
      %v1465 = vmax.f32 %v1144, %v1347
      %v1466 = vmax.f32 %v1145, %v1352
      %v1467 = vmax.f32 %v1146, %v1355
      %v1468 = vmax.f32 %v1147, %v1360
      %v1469 = vmax.f32 %v1148, %v1363
      %v1470 = vmax.f32 %v1149, %v1368
      %v1471 = vmax.f32 %v1150, %v1371
      %v1472 = vmax.f32 %v1151, %v1376
      %v1473 = vmax.f32 %v1152, %v1379
      %v1474 = vmax.f32 %v1153, %v1384
      %v1475 = vmax.f32 %v1154, %v1387
      %v1476 = vmax.f32 %v1155, %v1392
      %v1477 = vmax.f32 %v1156, %v1395
      %v1478 = vmax.f32 %v1157, %v1400
      %v1479 = vmax.f32 %v1158, %v1403
      %v1480 = vmax.f32 %v1159, %v1408
      %v1481 = vmax.f32 %v1160, %v1411
      %v1482 = vmax.f32 %v1161, %v1416
      %v1483 = vmax.f32 %v1162, %v1419
      %v1484 = vmax.f32 %v1163, %v1424
      %v1485 = vmax.f32 %v1164, %v1427
      %v1486 = vmax.f32 %v1165, %v1432
      %v1487 = vmax.f32 %v1166, %v1435
      %v1488 = vmax.f32 %v1167, %v1440
      %v1489 = vmax.f32 %v1168, %v1443
      %v1490 = vmax.f32 %v1169, %v1448
      %v1491 = vmax.f32 %v1170, %v1451
      %v1492 = vmax.f32 %v1171, %v1456
      %v1493 = vmax.f32 %v1172, %v1459
      %v1494 = vld [vmem:[%s2] sm:$0x1]
      %v1496 = vlaneseq
      %v1497 = vshrl.u32 %v1496, 7
      %v1498 = vsub.s32 0, %v1497
      %v1499 = vrot.slane %v1494, %v1498
      %v1501 = vadd.f32 %v1462, %v1499
      %v1502 = vadd.f32 %v1463, %v1499
      %v1503 = vadd.f32 %v1464, %v1499
      %v1504 = vadd.f32 %v1465, %v1499
      %v1505 = vadd.f32 %v1466, %v1499
      %v1506 = vadd.f32 %v1467, %v1499
      %v1507 = vadd.f32 %v1468, %v1499
      %v1508 = vadd.f32 %v1469, %v1499
      %v1509 = vadd.f32 %v1470, %v1499
      %v1510 = vadd.f32 %v1471, %v1499
      %v1511 = vadd.f32 %v1472, %v1499
      %v1512 = vadd.f32 %v1473, %v1499
      %v1513 = vadd.f32 %v1474, %v1499
      %v1514 = vadd.f32 %v1475, %v1499
      %v1515 = vadd.f32 %v1476, %v1499
      %v1516 = vadd.f32 %v1477, %v1499
      %v1517 = vadd.f32 %v1478, %v1499
      %v1518 = vadd.f32 %v1479, %v1499
      %v1519 = vadd.f32 %v1480, %v1499
      %v1520 = vadd.f32 %v1481, %v1499
      %v1521 = vadd.f32 %v1482, %v1499
      %v1522 = vadd.f32 %v1483, %v1499
      %v1523 = vadd.f32 %v1484, %v1499
      %v1524 = vadd.f32 %v1485, %v1499
      %v1525 = vadd.f32 %v1486, %v1499
      %v1526 = vadd.f32 %v1487, %v1499
      %v1527 = vadd.f32 %v1488, %v1499
      %v1528 = vadd.f32 %v1489, %v1499
      %v1529 = vadd.f32 %v1490, %v1499
      %v1530 = vadd.f32 %v1491, %v1499
      %v1531 = vadd.f32 %v1492, %v1499
      %v1532 = vadd.f32 %v1493, %v1499
      %v1533 = vmax.f32 %v1501, 0.0
      %v1534 = vmax.f32 %v1502, 0.0
      %v1535 = vmax.f32 %v1503, 0.0
      %v1536 = vmax.f32 %v1504, 0.0
      %v1537 = vmax.f32 %v1505, 0.0
      %v1538 = vmax.f32 %v1506, 0.0
      %v1539 = vmax.f32 %v1507, 0.0
      %v1540 = vmax.f32 %v1508, 0.0
      %v1541 = vmax.f32 %v1509, 0.0
      %v1542 = vmax.f32 %v1510, 0.0
      %v1543 = vmax.f32 %v1511, 0.0
      %v1544 = vmax.f32 %v1512, 0.0
      %v1545 = vmax.f32 %v1513, 0.0
      %v1546 = vmax.f32 %v1514, 0.0
      %v1547 = vmax.f32 %v1515, 0.0
      %v1548 = vmax.f32 %v1516, 0.0
      %v1549 = vmax.f32 %v1517, 0.0
      %v1550 = vmax.f32 %v1518, 0.0
      %v1551 = vmax.f32 %v1519, 0.0
      %v1552 = vmax.f32 %v1520, 0.0
      %v1553 = vmax.f32 %v1521, 0.0
      %v1554 = vmax.f32 %v1522, 0.0
      %v1555 = vmax.f32 %v1523, 0.0
      %v1556 = vmax.f32 %v1524, 0.0
      %v1557 = vmax.f32 %v1525, 0.0
      %v1558 = vmax.f32 %v1526, 0.0
      %v1559 = vmax.f32 %v1527, 0.0
      %v1560 = vmax.f32 %v1528, 0.0
      %v1561 = vmax.f32 %v1529, 0.0
      %v1562 = vmax.f32 %v1530, 0.0
      %v1563 = vmax.f32 %v1531, 0.0
      %v1564 = vmax.f32 %v1532, 0.0
      %v1565 = vpack.c.bf16 %v1534, %v1533
      %v1566 = vpack.c.bf16 %v1536, %v1535
      %v1567 = vpack.c.bf16 %v1538, %v1537
      %v1568 = vpack.c.bf16 %v1540, %v1539
      %v1569 = vpack.c.bf16 %v1542, %v1541
      %v1570 = vpack.c.bf16 %v1544, %v1543
      %v1571 = vpack.c.bf16 %v1546, %v1545
      %v1572 = vpack.c.bf16 %v1548, %v1547
      %v1573 = vpack.c.bf16 %v1550, %v1549
      %v1574 = vpack.c.bf16 %v1552, %v1551
      %v1575 = vpack.c.bf16 %v1554, %v1553
      %v1576 = vpack.c.bf16 %v1556, %v1555
      %v1577 = vpack.c.bf16 %v1558, %v1557
      %v1578 = vpack.c.bf16 %v1560, %v1559
      %v1579 = vpack.c.bf16 %v1562, %v1561
      %v1580 = vpack.c.bf16 %v1564, %v1563
      %v1597 = vunpack.c.l.b16 %v1565
      %v1598 = vunpack.c.h.b16 %v1565
      %v1599 = vunpack.c.l.b16 %v1566
      %v1600 = vunpack.c.h.b16 %v1566
      %v1601 = vunpack.c.l.b16 %v1567
      %v1602 = vunpack.c.h.b16 %v1567
      %v1603 = vunpack.c.l.b16 %v1568
      %v1604 = vunpack.c.h.b16 %v1568
      %v1605 = vunpack.c.l.b16 %v1569
      %v1606 = vunpack.c.h.b16 %v1569
      %v1607 = vunpack.c.l.b16 %v1570
      %v1608 = vunpack.c.h.b16 %v1570
      %v1609 = vunpack.c.l.b16 %v1571
      %v1610 = vunpack.c.h.b16 %v1571
      %v1611 = vunpack.c.l.b16 %v1572
      %v1612 = vunpack.c.h.b16 %v1572
      %v1613 = vunpack.c.l.b16 %v1573
      %v1614 = vunpack.c.h.b16 %v1573
      %v1615 = vunpack.c.l.b16 %v1574
      %v1616 = vunpack.c.h.b16 %v1574
      %v1617 = vunpack.c.l.b16 %v1575
      %v1618 = vunpack.c.h.b16 %v1575
      %v1619 = vunpack.c.l.b16 %v1576
      %v1620 = vunpack.c.h.b16 %v1576
      %v1621 = vunpack.c.l.b16 %v1577
      %v1622 = vunpack.c.h.b16 %v1577
      %v1623 = vunpack.c.l.b16 %v1578
      %v1624 = vunpack.c.h.b16 %v1578
      %v1625 = vunpack.c.l.b16 %v1579
      %v1626 = vunpack.c.h.b16 %v1579
      %v1627 = vunpack.c.l.b16 %v1580
      %v1628 = vunpack.c.h.b16 %v1580
      %v1629 = vpack.c.b16 %v1597, %v1597
      %v1630 = vpack.c.b16 %v1598, %v1598
      %v1631 = vpack.c.b16 %v1599, %v1599
      %v1632 = vpack.c.b16 %v1600, %v1600
      %v1633 = vpack.c.b16 %v1601, %v1601
      %v1634 = vpack.c.b16 %v1602, %v1602
      %v1635 = vpack.c.b16 %v1603, %v1603
      %v1636 = vpack.c.b16 %v1604, %v1604
      %v1637 = vpack.c.b16 %v1605, %v1605
      %v1638 = vpack.c.b16 %v1606, %v1606
      %v1639 = vpack.c.b16 %v1607, %v1607
      %v1640 = vpack.c.b16 %v1608, %v1608
      %v1641 = vpack.c.b16 %v1609, %v1609
      %v1642 = vpack.c.b16 %v1610, %v1610
      %v1643 = vpack.c.b16 %v1611, %v1611
      %v1644 = vpack.c.b16 %v1612, %v1612
      %v1645 = vpack.c.b16 %v1613, %v1613
      %v1646 = vpack.c.b16 %v1614, %v1614
      %v1647 = vpack.c.b16 %v1615, %v1615
      %v1648 = vpack.c.b16 %v1616, %v1616
      %v1649 = vpack.c.b16 %v1617, %v1617
      %v1650 = vpack.c.b16 %v1618, %v1618
      %v1651 = vpack.c.b16 %v1619, %v1619
      %v1652 = vpack.c.b16 %v1620, %v1620
      %v1653 = vpack.c.b16 %v1621, %v1621
      %v1654 = vpack.c.b16 %v1622, %v1622
      %v1655 = vpack.c.b16 %v1623, %v1623
      %v1656 = vpack.c.b16 %v1624, %v1624
      %v1657 = vpack.c.b16 %v1625, %v1625
      %v1658 = vpack.c.b16 %v1626, %v1626
      %v1659 = vpack.c.b16 %v1627, %v1627
      %v1660 = vpack.c.b16 %v1628, %v1628
      %1693 = vst [vmem:[%s175] sm:$0xf] %v1629
      %1694 = vst [vmem:[%s175 + $0x4] sm:$0xf] %v1630
      %1695 = vst [vmem:[%s175 + $0x8] sm:$0xf] %v1631
      %1696 = vst [vmem:[%s175 + $0xc] sm:$0xf] %v1632
      %1697 = vst [vmem:[%s175 + $0x10] sm:$0xf] %v1633
      %1698 = vst [vmem:[%s175 + $0x14] sm:$0xf] %v1634
      %1699 = vst [vmem:[%s175 + $0x18] sm:$0xf] %v1635
      %1700 = vst [vmem:[%s175 + $0x1c] sm:$0xf] %v1636
      %1701 = vst [vmem:[%s175 + $0x20] sm:$0xf] %v1637
      %1702 = vst [vmem:[%s175 + $0x24] sm:$0xf] %v1638
      %1703 = vst [vmem:[%s175 + $0x28] sm:$0xf] %v1639
      %1704 = vst [vmem:[%s175 + $0x2c] sm:$0xf] %v1640
      %1705 = vst [vmem:[%s175 + $0x30] sm:$0xf] %v1641
      %1706 = vst [vmem:[%s175 + $0x34] sm:$0xf] %v1642
      %1707 = vst [vmem:[%s175 + $0x38] sm:$0xf] %v1643
      %1708 = vst [vmem:[%s175 + $0x3c] sm:$0xf] %v1644
      %1709 = vst [vmem:[%s175 + $0x40] sm:$0xf] %v1645
      %1710 = vst [vmem:[%s175 + $0x44] sm:$0xf] %v1646
      %1711 = vst [vmem:[%s175 + $0x48] sm:$0xf] %v1647
      %1712 = vst [vmem:[%s175 + $0x4c] sm:$0xf] %v1648
      %1713 = vst [vmem:[%s175 + $0x50] sm:$0xf] %v1649
      %1714 = vst [vmem:[%s175 + $0x54] sm:$0xf] %v1650
      %1715 = vst [vmem:[%s175 + $0x58] sm:$0xf] %v1651
      %1716 = vst [vmem:[%s175 + $0x5c] sm:$0xf] %v1652
      %1717 = vst [vmem:[%s175 + $0x60] sm:$0xf] %v1653
      %1718 = vst [vmem:[%s175 + $0x64] sm:$0xf] %v1654
      %1719 = vst [vmem:[%s175 + $0x68] sm:$0xf] %v1655
      %1720 = vst [vmem:[%s175 + $0x6c] sm:$0xf] %v1656
      %1721 = vst [vmem:[%s175 + $0x70] sm:$0xf] %v1657
      %1722 = vst [vmem:[%s175 + $0x74] sm:$0xf] %v1658
      %1723 = vst [vmem:[%s175 + $0x78] sm:$0xf] %v1659
      %1724 = vst [vmem:[%s175 + $0x7c] sm:$0xf] %v1660
      %s1725 = smul.u32 32, %s14
      %p1726 = scmp.lt.s32.totalorder %s1725, 63
      %s1727 = scalar_select %p1726, %s1725, 63
      %s1728 = smul.addr %s1727, 4
      %s1729 = scalar_lea.vmem %s3, %s1728
      // Predicated region
      $region33: #{net_forward.3} parent=31 // pred_check
        %p1730 = pneg %p100
      $region34: #{net_forward.3} parent=31 // pred_check_branch
        %1732 = sbr.rel (%p1730) target = $region36
      $region35: #{net_forward.3} parent=31 // pred_region
        %s1733 = smul.u32 32, %s14
      $region36: #{net_forward.3} parent=31 // pred_fallthru
        _
    $region32: #{net_forward.3} parent=5 // pred_fallthru
      _
    %p1734 = scmp.le.s32.totalorder 2, %s9
    // Predicated region
    $region37: #{net_forward.3} parent=5 // pred_check
      %p1735 = pneg %p1734
    $region38: #{net_forward.3} parent=5 // pred_check_branch
      %1737 = sbr.rel (%p1735) target = $region40
    $region39: #{net_forward.3} parent=5 // pred_region
      %s1738 = ssub.s32 %s9, 2
      // Predicated region
      $region41: #{net_forward.3} parent=39 // pred_check
        %p1739 = pneg %p106
      $region42: #{net_forward.3} parent=39 // pred_check_branch
        %1741 = sbr.rel (%p1739) target = $region44
      $region43: #{net_forward.3} parent=39 // pred_region
        %s1742 = smul.u32 32, %s15
        %p1743 = scmp.lt.s32.totalorder %s1742, 63
        %s1744 = scalar_select %p1743, %s1742, 63
        %s1745 = smul.addr %s1744, 4
        %s1746 = scalar_lea.vmem %s3, %s1745
      $region44: #{net_forward.3} parent=39 // pred_fallthru
        _
    $region40: #{net_forward.3} parent=5 // pred_fallthru
      _
  $region6: #{net_forward.3} parent=0 // loop_footer
    %s13 = sadd.s32 1, %s9
  $region7: #{net_forward.3} parent=0 // loop_footer_branch
    %8 = sbr.rel target = $region3
  $region8: #{net_forward.3} parent=0 // loop_exit
    _

// kernel: net_forward.4
$region0: #{net_forward.4}
  #allocation0 [shape = 'u32[]', space=smem, size = 0x4, offset = 0x4, fixed_abs, tag = 'smem constant byte address 0x4 - core index']
  #allocation1 [shape = 'u32[144,128]{1,0:T(1,128)}', space=vmem, size = 0x12000, scoped, tag = 'internal scratch']
  %s0 = inlined_call_operand.vmem [shape: bf16[56,1024], index: 0, kind: input, shape index: {}]
  %s1 = inlined_call_operand.vmem [shape: bf16[256,128], index: 1, kind: input, shape index: {}]
  %s2 = inlined_call_operand.vmem [shape: f32[1,128], index: 2, kind: input, shape index: {}]
  %s3 = inlined_call_operand.vmem [shape: bf16[56,128], index: 3, kind: output, shape index: {}]
  %s4 = sld [smem:[#allocation0]]
  $region22: #{net_forward.4} parent=0
    _
  %s6 = ssub.s32 1, %s4
  %s7 = scalar_select 0, %s6, %s4
  // Predicated region
  $region2: #{net_forward.4} parent=0 // pred_check
    _
  $region3: #{net_forward.4} parent=0 // pred_check_branch
    %9 = sbr.rel (0) target = $region5
  $region4: #{net_forward.4} parent=0 // pred_region
    _
  $region5: #{net_forward.4} parent=0 // pred_fallthru
    _
  // Predicated region
  $region6: #{net_forward.4} parent=0 // pred_check
    _
  $region7: #{net_forward.4} parent=0 // pred_check_branch
    %11 = sbr.rel (0) target = $region9
  $region8: #{net_forward.4} parent=0 // pred_region
    _
  $region9: #{net_forward.4} parent=0 // pred_fallthru
    _
  // Predicated region
  $region10: #{net_forward.4} parent=0 // pred_check
    _
  $region11: #{net_forward.4} parent=0 // pred_check_branch
    %13 = sbr.rel (0) target = $region13
  $region12: #{net_forward.4} parent=0 // pred_region
    _
  $region13: #{net_forward.4} parent=0 // pred_fallthru
    _
  %v15 = vld [vmem:[%s1] sm:$0xf]
  %v16 = vld [vmem:[%s1 + $0x4] sm:$0xf]
  %v17 = vld [vmem:[%s1 + $0x8] sm:$0xf]
  %v18 = vld [vmem:[%s1 + $0xc] sm:$0xf]
  %v19 = vld [vmem:[%s1 + $0x10] sm:$0xf]
  %v20 = vld [vmem:[%s1 + $0x14] sm:$0xf]
  %v21 = vld [vmem:[%s1 + $0x18] sm:$0xf]
  %v22 = vld [vmem:[%s1 + $0x1c] sm:$0xf]
  %v23 = vld [vmem:[%s1 + $0x20] sm:$0xf]
  %v24 = vld [vmem:[%s1 + $0x24] sm:$0xf]
  %v25 = vld [vmem:[%s1 + $0x28] sm:$0xf]
  %v26 = vld [vmem:[%s1 + $0x2c] sm:$0xf]
  %v27 = vld [vmem:[%s1 + $0x30] sm:$0xf]
  %v28 = vld [vmem:[%s1 + $0x34] sm:$0xf]
  %v29 = vld [vmem:[%s1 + $0x38] sm:$0xf]
  %v30 = vld [vmem:[%s1 + $0x3c] sm:$0xf]
  %v31 = vld [vmem:[%s1 + $0x40] sm:$0xf]
  %v32 = vld [vmem:[%s1 + $0x44] sm:$0xf]
  %v33 = vld [vmem:[%s1 + $0x48] sm:$0xf]
  %v34 = vld [vmem:[%s1 + $0x4c] sm:$0xf]
  %v35 = vld [vmem:[%s1 + $0x50] sm:$0xf]
  %v36 = vld [vmem:[%s1 + $0x54] sm:$0xf]
  %v37 = vld [vmem:[%s1 + $0x58] sm:$0xf]
  %v38 = vld [vmem:[%s1 + $0x5c] sm:$0xf]
  %v39 = vld [vmem:[%s1 + $0x60] sm:$0xf]
  %v40 = vld [vmem:[%s1 + $0x64] sm:$0xf]
  %v41 = vld [vmem:[%s1 + $0x68] sm:$0xf]
  %v42 = vld [vmem:[%s1 + $0x6c] sm:$0xf]
  %v43 = vld [vmem:[%s1 + $0x70] sm:$0xf]
  %v44 = vld [vmem:[%s1 + $0x74] sm:$0xf]
  %v45 = vld [vmem:[%s1 + $0x78] sm:$0xf]
  %v46 = vld [vmem:[%s1 + $0x7c] sm:$0xf]
  %v47 = vld [vmem:[%s0] sm:$0xff]
  %v48 = vld [vmem:[%s0 + $0x20] sm:$0xff]
  %v49 = vld [vmem:[%s0 + $0x40] sm:$0xff]
  %v50 = vld [vmem:[%s0 + $0x60] sm:$0xff]
  %v51 = vld [vmem:[%s0 + $0x80] sm:$0xff]
  %v52 = vld [vmem:[%s0 + $0xa0] sm:$0xff]
  %v53 = vld [vmem:[%s0 + $0xc0] sm:$0xff]
  %v61 = vunpack.c.l.b16 %v47
  %v62 = vunpack.c.h.b16 %v47
  %v63 = vunpack.c.l.b16 %v48
  %v64 = vunpack.c.h.b16 %v48
  %v65 = vunpack.c.l.b16 %v49
  %v66 = vunpack.c.h.b16 %v49
  %v67 = vunpack.c.l.b16 %v50
  %v68 = vunpack.c.h.b16 %v50
  %v69 = vunpack.c.l.b16 %v51
  %v70 = vunpack.c.h.b16 %v51
  %v71 = vunpack.c.l.b16 %v52
  %v72 = vunpack.c.h.b16 %v52
  %v73 = vunpack.c.l.b16 %v53
  %v74 = vunpack.c.h.b16 %v53
  %v75 = vpack.c.b16 %v63, %v61
  %v76 = vpack.c.b16 %v64, %v62
  %v77 = vpack.c.b16 %v67, %v65
  %v78 = vpack.c.b16 %v68, %v66
  %v79 = vpack.c.b16 %v71, %v69
  %v80 = vpack.c.b16 %v72, %v70
  %v81 = vpack.c.b16 %v73, %v73
  %v82 = vpack.c.b16 %v74, %v74
  %v123 = vunpack.c.l.b16 %v15
  %v124 = vunpack.c.l.b16 %v16
  %v125 = vunpack.c.l.b16 %v17
  %v126 = vunpack.c.l.b16 %v18
  %v127 = vunpack.c.l.b16 %v19
  %v128 = vunpack.c.l.b16 %v20
  %v129 = vunpack.c.l.b16 %v21
  %v130 = vunpack.c.l.b16 %v22
  %v131 = vunpack.c.l.b16 %v23
  %v132 = vunpack.c.l.b16 %v24
  %v133 = vunpack.c.l.b16 %v25
  %v134 = vunpack.c.l.b16 %v26
  %v135 = vunpack.c.l.b16 %v27
  %v136 = vunpack.c.l.b16 %v28
  %v137 = vunpack.c.l.b16 %v29
  %v138 = vunpack.c.l.b16 %v30
  %v139 = vunpack.c.l.b16 %v31
  %v140 = vunpack.c.l.b16 %v32
  %v141 = vunpack.c.l.b16 %v33
  %v142 = vunpack.c.l.b16 %v34
  %v143 = vunpack.c.l.b16 %v35
  %v144 = vunpack.c.l.b16 %v36
  %v145 = vunpack.c.l.b16 %v37
  %v146 = vunpack.c.l.b16 %v38
  %v147 = vunpack.c.l.b16 %v39
  %v148 = vunpack.c.l.b16 %v40
  %v149 = vunpack.c.l.b16 %v41
  %v150 = vunpack.c.l.b16 %v42
  %v151 = vunpack.c.l.b16 %v43
  %v152 = vunpack.c.l.b16 %v44
  %v153 = vunpack.c.l.b16 %v45
  %v154 = vunpack.c.l.b16 %v46
  %v155 = vpack.c.b16 %v124, %v123
  %v156 = vpack.c.b16 %v126, %v125
  %v157 = vpack.c.b16 %v128, %v127
  %v158 = vpack.c.b16 %v130, %v129
  %v159 = vpack.c.b16 %v132, %v131
  %v160 = vpack.c.b16 %v134, %v133
  %v161 = vpack.c.b16 %v136, %v135
  %v162 = vpack.c.b16 %v138, %v137
  %v163 = vpack.c.b16 %v140, %v139
  %v164 = vpack.c.b16 %v142, %v141
  %v165 = vpack.c.b16 %v144, %v143
  %v166 = vpack.c.b16 %v146, %v145
  %v167 = vpack.c.b16 %v148, %v147
  %v168 = vpack.c.b16 %v150, %v149
  %v169 = vpack.c.b16 %v152, %v151
  %v170 = vpack.c.b16 %v154, %v153
  %187 = vmatprep.subr.bf16.mxu0 0
  %188 = vmatpush1.bf16.msra.mxu0 %v155
  %189 = vmatprep.subr.bf16.mxu0 0
  %190 = vmatpush1.bf16.msra.mxu0 %v156
  %191 = vmatprep.subr.bf16.mxu0 0
  %192 = vmatpush1.bf16.msra.mxu0 %v157
  %193 = vmatprep.subr.bf16.mxu0 0
  %194 = vmatpush1.bf16.msra.mxu0 %v158
  %195 = vmatprep.subr.bf16.mxu0 0
  %196 = vmatpush1.bf16.msra.mxu0 %v159
  %197 = vmatprep.subr.bf16.mxu0 0
  %198 = vmatpush1.bf16.msra.mxu0 %v160
  %199 = vmatprep.subr.bf16.mxu0 0
  %200 = vmatpush1.bf16.msra.mxu0 %v161
  %201 = vmatprep.subr.bf16.mxu0 0
  %202 = vmatpush1.bf16.msra.mxu0 %v162
  %203 = vmatprep.subr.bf16.mxu0 0
  %204 = vmatpush1.bf16.msra.mxu0 %v163
  %205 = vmatprep.subr.bf16.mxu0 0
  %206 = vmatpush1.bf16.msra.mxu0 %v164
  %207 = vmatprep.subr.bf16.mxu0 0
  %208 = vmatpush1.bf16.msra.mxu0 %v165
  %209 = vmatprep.subr.bf16.mxu0 0
  %210 = vmatpush1.bf16.msra.mxu0 %v166
  %211 = vmatprep.subr.bf16.mxu0 0
  %212 = vmatpush1.bf16.msra.mxu0 %v167
  %213 = vmatprep.subr.bf16.mxu0 0
  %214 = vmatpush1.bf16.msra.mxu0 %v168
  %215 = vmatprep.subr.bf16.mxu0 0
  %216 = vmatpush1.bf16.msra.mxu0 %v169
  %217 = vmatprep.subr.bf16.mxu0 0
  %218 = vmatpush1.bf16.msra.mxu0 %v170
  %219 = vmatprep.mubr.bf16.mxu0 %v76
  %220 = vmatmul.mubr.bf16.gmra.mrb[0].mxu0 %v75
  %v221 = vpop.f32.mrb[0].mxu0
  %v222 = vadd.f32 0.0, %v221
  %v223 = vpop.f32.mrb[0].mxu0
  %v224 = vpop.f32.mrb[0].mxu0
  %v225 = vadd.f32 0.0, %v224
  %v226 = vpop.f32.mrb[0].mxu0
  %227 = vmatprep.mubr.bf16.mxu0 %v78
  %228 = vmatmul.mubr.bf16.gmra.mrb[0].mxu0 %v77
  %v229 = vpop.f32.mrb[0].mxu0
  %v230 = vadd.f32 0.0, %v229
  %v231 = vpop.f32.mrb[0].mxu0
  %v232 = vpop.f32.mrb[0].mxu0
  %v233 = vadd.f32 0.0, %v232
  %v234 = vpop.f32.mrb[0].mxu0
  %235 = vmatprep.mubr.bf16.mxu0 %v80
  %236 = vmatmul.mubr.bf16.gmra.mrb[0].mxu0 %v79
  %v237 = vpop.f32.mrb[0].mxu0
  %v238 = vadd.f32 0.0, %v237
  %v239 = vpop.f32.mrb[0].mxu0
  %v240 = vpop.f32.mrb[0].mxu0
  %v241 = vadd.f32 0.0, %v240
  %v242 = vpop.f32.mrb[0].mxu0
  %243 = vmatprep.mubr.bf16.mxu0 %v82
  %244 = vmatmul.mubr.bf16.gmra.mrb[0].mxu0 %v81
  %v245 = vpop.f32.mrb[0].mxu0
  %v246 = vadd.f32 0.0, %v245
  %v247 = vpop.f32.mrb[0].mxu0
  %v248 = vpop.f32.mrb[0].mxu0
  %v249 = vpop.f32.mrb[0].mxu0
  %250 = vdwg.mxu0
  %v251 = vld [vmem:[%s0 + $0x8] sm:$0xff]
  %v252 = vld [vmem:[%s0 + $0x28] sm:$0xff]
  %v253 = vld [vmem:[%s0 + $0x48] sm:$0xff]
  %v254 = vld [vmem:[%s0 + $0x68] sm:$0xff]
  %v255 = vld [vmem:[%s0 + $0x88] sm:$0xff]
  %v256 = vld [vmem:[%s0 + $0xa8] sm:$0xff]
  %v257 = vld [vmem:[%s0 + $0xc8] sm:$0xff]
  %v265 = vunpack.c.l.b16 %v251
  %v266 = vunpack.c.h.b16 %v251
  %v267 = vunpack.c.l.b16 %v252
  %v268 = vunpack.c.h.b16 %v252
  %v269 = vunpack.c.l.b16 %v253
  %v270 = vunpack.c.h.b16 %v253
  %v271 = vunpack.c.l.b16 %v254
  %v272 = vunpack.c.h.b16 %v254
  %v273 = vunpack.c.l.b16 %v255
  %v274 = vunpack.c.h.b16 %v255
  %v275 = vunpack.c.l.b16 %v256
  %v276 = vunpack.c.h.b16 %v256
  %v277 = vunpack.c.l.b16 %v257
  %v278 = vunpack.c.h.b16 %v257
  %v279 = vpack.c.b16 %v267, %v265
  %v280 = vpack.c.b16 %v268, %v266
  %v281 = vpack.c.b16 %v271, %v269
  %v282 = vpack.c.b16 %v272, %v270
  %v283 = vpack.c.b16 %v275, %v273
  %v284 = vpack.c.b16 %v276, %v274
  %v285 = vpack.c.b16 %v277, %v277
  %v286 = vpack.c.b16 %v278, %v278
  %295 = vmatprep.subr.bf16.mxu0 0
  %296 = vmatpush1.bf16.msra.mxu0 %v155
  %297 = vmatprep.subr.bf16.mxu0 0
  %298 = vmatpush1.bf16.msra.mxu0 %v156
  %299 = vmatprep.subr.bf16.mxu0 0
  %300 = vmatpush1.bf16.msra.mxu0 %v157
  %301 = vmatprep.subr.bf16.mxu0 0
  %302 = vmatpush1.bf16.msra.mxu0 %v158
  %303 = vmatprep.subr.bf16.mxu0 0
  %304 = vmatpush1.bf16.msra.mxu0 %v159
  %305 = vmatprep.subr.bf16.mxu0 0
  %306 = vmatpush1.bf16.msra.mxu0 %v160
  %307 = vmatprep.subr.bf16.mxu0 0
  %308 = vmatpush1.bf16.msra.mxu0 %v161
  %309 = vmatprep.subr.bf16.mxu0 0
  %310 = vmatpush1.bf16.msra.mxu0 %v162
  %311 = vmatprep.subr.bf16.mxu0 0
  %312 = vmatpush1.bf16.msra.mxu0 %v163
  %313 = vmatprep.subr.bf16.mxu0 0
  %314 = vmatpush1.bf16.msra.mxu0 %v164
  %315 = vmatprep.subr.bf16.mxu0 0
  %316 = vmatpush1.bf16.msra.mxu0 %v165
  %317 = vmatprep.subr.bf16.mxu0 0
  %318 = vmatpush1.bf16.msra.mxu0 %v166
  %319 = vmatprep.subr.bf16.mxu0 0
  %320 = vmatpush1.bf16.msra.mxu0 %v167
  %321 = vmatprep.subr.bf16.mxu0 0
  %322 = vmatpush1.bf16.msra.mxu0 %v168
  %323 = vmatprep.subr.bf16.mxu0 0
  %324 = vmatpush1.bf16.msra.mxu0 %v169
  %325 = vmatprep.subr.bf16.mxu0 0
  %326 = vmatpush1.bf16.msra.mxu0 %v170
  %327 = vmatprep.mubr.bf16.mxu0 %v280
  %328 = vmatmul.mubr.bf16.gmra.mrb[0].mxu0 %v279
  %v329 = vpop.f32.mrb[0].mxu0
  %v330 = vadd.f32 0.0, %v329
  %v331 = vpop.f32.mrb[0].mxu0
  %v332 = vpop.f32.mrb[0].mxu0
  %v333 = vadd.f32 0.0, %v332
  %v334 = vpop.f32.mrb[0].mxu0
  %335 = vmatprep.mubr.bf16.mxu0 %v282
  %336 = vmatmul.mubr.bf16.gmra.mrb[0].mxu0 %v281
  %v337 = vpop.f32.mrb[0].mxu0
  %v338 = vadd.f32 0.0, %v337
  %v339 = vpop.f32.mrb[0].mxu0
  %v340 = vpop.f32.mrb[0].mxu0
  %v341 = vadd.f32 0.0, %v340
  %v342 = vpop.f32.mrb[0].mxu0
  %343 = vmatprep.mubr.bf16.mxu0 %v284
  %344 = vmatmul.mubr.bf16.gmra.mrb[0].mxu0 %v283
  %v345 = vpop.f32.mrb[0].mxu0
  %v346 = vadd.f32 0.0, %v345
  %v347 = vpop.f32.mrb[0].mxu0
  %v348 = vpop.f32.mrb[0].mxu0
  %v349 = vadd.f32 0.0, %v348
  %v350 = vpop.f32.mrb[0].mxu0
  %351 = vmatprep.mubr.bf16.mxu0 %v286
  %352 = vmatmul.mubr.bf16.gmra.mrb[0].mxu0 %v285
  %v353 = vpop.f32.mrb[0].mxu0
  %v354 = vadd.f32 0.0, %v353
  %v355 = vpop.f32.mrb[0].mxu0
  %v356 = vpop.f32.mrb[0].mxu0
  %v357 = vpop.f32.mrb[0].mxu0
  %358 = vdwg.mxu0
  %v359 = vmax.f32 %v222, %v330
  %v360 = vmax.f32 %v225, %v333
  %v361 = vmax.f32 %v230, %v338
  %v362 = vmax.f32 %v233, %v341
  %v363 = vmax.f32 %v238, %v346
  %v364 = vmax.f32 %v241, %v349
  %v365 = vmax.f32 %v246, %v354
  %v366 = vld [vmem:[%s0 + $0x10] sm:$0xff]
  %v367 = vld [vmem:[%s0 + $0x30] sm:$0xff]
  %v368 = vld [vmem:[%s0 + $0x50] sm:$0xff]
  %v369 = vld [vmem:[%s0 + $0x70] sm:$0xff]
  %v370 = vld [vmem:[%s0 + $0x90] sm:$0xff]
  %v371 = vld [vmem:[%s0 + $0xb0] sm:$0xff]
  %v372 = vld [vmem:[%s0 + $0xd0] sm:$0xff]
  %v380 = vunpack.c.l.b16 %v366
  %v381 = vunpack.c.h.b16 %v366
  %v382 = vunpack.c.l.b16 %v367
  %v383 = vunpack.c.h.b16 %v367
  %v384 = vunpack.c.l.b16 %v368
  %v385 = vunpack.c.h.b16 %v368
  %v386 = vunpack.c.l.b16 %v369
  %v387 = vunpack.c.h.b16 %v369
  %v388 = vunpack.c.l.b16 %v370
  %v389 = vunpack.c.h.b16 %v370
  %v390 = vunpack.c.l.b16 %v371
  %v391 = vunpack.c.h.b16 %v371
  %v392 = vunpack.c.l.b16 %v372
  %v393 = vunpack.c.h.b16 %v372
  %v394 = vpack.c.b16 %v382, %v380
  %v395 = vpack.c.b16 %v383, %v381
  %v396 = vpack.c.b16 %v386, %v384
  %v397 = vpack.c.b16 %v387, %v385
  %v398 = vpack.c.b16 %v390, %v388
  %v399 = vpack.c.b16 %v391, %v389
  %v400 = vpack.c.b16 %v392, %v392
  %v401 = vpack.c.b16 %v393, %v393
  %410 = vmatprep.subr.bf16.mxu0 0
  %411 = vmatpush1.bf16.msra.mxu0 %v155
  %412 = vmatprep.subr.bf16.mxu0 0
  %413 = vmatpush1.bf16.msra.mxu0 %v156
  %414 = vmatprep.subr.bf16.mxu0 0
  %415 = vmatpush1.bf16.msra.mxu0 %v157
  %416 = vmatprep.subr.bf16.mxu0 0
  %417 = vmatpush1.bf16.msra.mxu0 %v158
  %418 = vmatprep.subr.bf16.mxu0 0
  %419 = vmatpush1.bf16.msra.mxu0 %v159
  %420 = vmatprep.subr.bf16.mxu0 0
  %421 = vmatpush1.bf16.msra.mxu0 %v160
  %422 = vmatprep.subr.bf16.mxu0 0
  %423 = vmatpush1.bf16.msra.mxu0 %v161
  %424 = vmatprep.subr.bf16.mxu0 0
  %425 = vmatpush1.bf16.msra.mxu0 %v162
  %426 = vmatprep.subr.bf16.mxu0 0
  %427 = vmatpush1.bf16.msra.mxu0 %v163
  %428 = vmatprep.subr.bf16.mxu0 0
  %429 = vmatpush1.bf16.msra.mxu0 %v164
  %430 = vmatprep.subr.bf16.mxu0 0
  %431 = vmatpush1.bf16.msra.mxu0 %v165
  %432 = vmatprep.subr.bf16.mxu0 0
  %433 = vmatpush1.bf16.msra.mxu0 %v166
  %434 = vmatprep.subr.bf16.mxu0 0
  %435 = vmatpush1.bf16.msra.mxu0 %v167
  %436 = vmatprep.subr.bf16.mxu0 0
  %437 = vmatpush1.bf16.msra.mxu0 %v168
  %438 = vmatprep.subr.bf16.mxu0 0
  %439 = vmatpush1.bf16.msra.mxu0 %v169
  %440 = vmatprep.subr.bf16.mxu0 0
  %441 = vmatpush1.bf16.msra.mxu0 %v170
  %442 = vmatprep.mubr.bf16.mxu0 %v395
  %443 = vmatmul.mubr.bf16.gmra.mrb[0].mxu0 %v394
  %v444 = vpop.f32.mrb[0].mxu0
  %v445 = vadd.f32 0.0, %v444
  %v446 = vpop.f32.mrb[0].mxu0
  %v447 = vpop.f32.mrb[0].mxu0
  %v448 = vadd.f32 0.0, %v447
  %v449 = vpop.f32.mrb[0].mxu0
  %450 = vmatprep.mubr.bf16.mxu0 %v397
  %451 = vmatmul.mubr.bf16.gmra.mrb[0].mxu0 %v396
  %v452 = vpop.f32.mrb[0].mxu0
  %v453 = vadd.f32 0.0, %v452
  %v454 = vpop.f32.mrb[0].mxu0
  %v455 = vpop.f32.mrb[0].mxu0
  %v456 = vadd.f32 0.0, %v455
  %v457 = vpop.f32.mrb[0].mxu0
  %458 = vmatprep.mubr.bf16.mxu0 %v399
  %459 = vmatmul.mubr.bf16.gmra.mrb[0].mxu0 %v398
  %v460 = vpop.f32.mrb[0].mxu0
  %v461 = vadd.f32 0.0, %v460
  %v462 = vpop.f32.mrb[0].mxu0
  %v463 = vpop.f32.mrb[0].mxu0
  %v464 = vadd.f32 0.0, %v463
  %v465 = vpop.f32.mrb[0].mxu0
  %466 = vmatprep.mubr.bf16.mxu0 %v401
  %467 = vmatmul.mubr.bf16.gmra.mrb[0].mxu0 %v400
  %v468 = vpop.f32.mrb[0].mxu0
  %v469 = vadd.f32 0.0, %v468
  %v470 = vpop.f32.mrb[0].mxu0
  %v471 = vpop.f32.mrb[0].mxu0
  %v472 = vpop.f32.mrb[0].mxu0
  %473 = vdwg.mxu0
  %v474 = vmax.f32 %v359, %v445
  %v475 = vmax.f32 %v360, %v448
  %v476 = vmax.f32 %v361, %v453
  %v477 = vmax.f32 %v362, %v456
  %v478 = vmax.f32 %v363, %v461
  %v479 = vmax.f32 %v364, %v464
  %v480 = vmax.f32 %v365, %v469
  %v481 = vld [vmem:[%s0 + $0x18] sm:$0xff]
  %v482 = vld [vmem:[%s0 + $0x38] sm:$0xff]
  %v483 = vld [vmem:[%s0 + $0x58] sm:$0xff]
  %v484 = vld [vmem:[%s0 + $0x78] sm:$0xff]
  %v485 = vld [vmem:[%s0 + $0x98] sm:$0xff]
  %v486 = vld [vmem:[%s0 + $0xb8] sm:$0xff]
  %v487 = vld [vmem:[%s0 + $0xd8] sm:$0xff]
  %v495 = vunpack.c.l.b16 %v481
  %v496 = vunpack.c.h.b16 %v481
  %v497 = vunpack.c.l.b16 %v482
  %v498 = vunpack.c.h.b16 %v482
  %v499 = vunpack.c.l.b16 %v483
  %v500 = vunpack.c.h.b16 %v483
  %v501 = vunpack.c.l.b16 %v484
  %v502 = vunpack.c.h.b16 %v484
  %v503 = vunpack.c.l.b16 %v485
  %v504 = vunpack.c.h.b16 %v485
  %v505 = vunpack.c.l.b16 %v486
  %v506 = vunpack.c.h.b16 %v486
  %v507 = vunpack.c.l.b16 %v487
  %v508 = vunpack.c.h.b16 %v487
  %v509 = vpack.c.b16 %v497, %v495
  %v510 = vpack.c.b16 %v498, %v496
  %v511 = vpack.c.b16 %v501, %v499
  %v512 = vpack.c.b16 %v502, %v500
  %v513 = vpack.c.b16 %v505, %v503
  %v514 = vpack.c.b16 %v506, %v504
  %v515 = vpack.c.b16 %v507, %v507
  %v516 = vpack.c.b16 %v508, %v508
  %525 = vmatprep.subr.bf16.mxu0 0
  %526 = vmatpush1.bf16.msra.mxu0 %v155
  %527 = vmatprep.subr.bf16.mxu0 0
  %528 = vmatpush1.bf16.msra.mxu0 %v156
  %529 = vmatprep.subr.bf16.mxu0 0
  %530 = vmatpush1.bf16.msra.mxu0 %v157
  %531 = vmatprep.subr.bf16.mxu0 0
  %532 = vmatpush1.bf16.msra.mxu0 %v158
  %533 = vmatprep.subr.bf16.mxu0 0
  %534 = vmatpush1.bf16.msra.mxu0 %v159
  %535 = vmatprep.subr.bf16.mxu0 0
  %536 = vmatpush1.bf16.msra.mxu0 %v160
  %537 = vmatprep.subr.bf16.mxu0 0
  %538 = vmatpush1.bf16.msra.mxu0 %v161
  %539 = vmatprep.subr.bf16.mxu0 0
  %540 = vmatpush1.bf16.msra.mxu0 %v162
  %541 = vmatprep.subr.bf16.mxu0 0
  %542 = vmatpush1.bf16.msra.mxu0 %v163
  %543 = vmatprep.subr.bf16.mxu0 0
  %544 = vmatpush1.bf16.msra.mxu0 %v164
  %545 = vmatprep.subr.bf16.mxu0 0
  %546 = vmatpush1.bf16.msra.mxu0 %v165
  %547 = vmatprep.subr.bf16.mxu0 0
  %548 = vmatpush1.bf16.msra.mxu0 %v166
  %549 = vmatprep.subr.bf16.mxu0 0
  %550 = vmatpush1.bf16.msra.mxu0 %v167
  %551 = vmatprep.subr.bf16.mxu0 0
  %552 = vmatpush1.bf16.msra.mxu0 %v168
  %553 = vmatprep.subr.bf16.mxu0 0
  %554 = vmatpush1.bf16.msra.mxu0 %v169
  %555 = vmatprep.subr.bf16.mxu0 0
  %556 = vmatpush1.bf16.msra.mxu0 %v170
  %557 = vmatprep.mubr.bf16.mxu0 %v510
  %558 = vmatmul.mubr.bf16.gmra.mrb[0].mxu0 %v509
  %v559 = vpop.f32.mrb[0].mxu0
  %v560 = vadd.f32 0.0, %v559
  %v561 = vpop.f32.mrb[0].mxu0
  %v562 = vpop.f32.mrb[0].mxu0
  %v563 = vadd.f32 0.0, %v562
  %v564 = vpop.f32.mrb[0].mxu0
  %565 = vmatprep.mubr.bf16.mxu0 %v512
  %566 = vmatmul.mubr.bf16.gmra.mrb[0].mxu0 %v511
  %v567 = vpop.f32.mrb[0].mxu0
  %v568 = vadd.f32 0.0, %v567
  %v569 = vpop.f32.mrb[0].mxu0
  %v570 = vpop.f32.mrb[0].mxu0
  %v571 = vadd.f32 0.0, %v570
  %v572 = vpop.f32.mrb[0].mxu0
  %573 = vmatprep.mubr.bf16.mxu0 %v514
  %574 = vmatmul.mubr.bf16.gmra.mrb[0].mxu0 %v513
  %v575 = vpop.f32.mrb[0].mxu0
  %v576 = vadd.f32 0.0, %v575
  %v577 = vpop.f32.mrb[0].mxu0
  %v578 = vpop.f32.mrb[0].mxu0
  %v579 = vadd.f32 0.0, %v578
  %v580 = vpop.f32.mrb[0].mxu0
  %581 = vmatprep.mubr.bf16.mxu0 %v516
  %582 = vmatmul.mubr.bf16.gmra.mrb[0].mxu0 %v515
  %v583 = vpop.f32.mrb[0].mxu0
  %v584 = vadd.f32 0.0, %v583
  %v585 = vpop.f32.mrb[0].mxu0
  %v586 = vpop.f32.mrb[0].mxu0
  %v587 = vpop.f32.mrb[0].mxu0
  %588 = vdwg.mxu0
  %v589 = vmax.f32 %v474, %v560
  %v590 = vmax.f32 %v475, %v563
  %v591 = vmax.f32 %v476, %v568
  %v592 = vmax.f32 %v477, %v571
  %v593 = vmax.f32 %v478, %v576
  %v594 = vmax.f32 %v479, %v579
  %v595 = vmax.f32 %v480, %v584
  %v596 = vld [vmem:[%s2] sm:$0x1]
  %v598 = vlaneseq
  %v599 = vshrl.u32 %v598, 7
  %v600 = vsub.s32 0, %v599
  %v601 = vrot.slane %v596, %v600
  %v603 = vadd.f32 %v589, %v601
  %v604 = vadd.f32 %v590, %v601
  %v605 = vadd.f32 %v591, %v601
  %v606 = vadd.f32 %v592, %v601
  %v607 = vadd.f32 %v593, %v601
  %v608 = vadd.f32 %v594, %v601
  %v609 = vadd.f32 %v595, %v601
  %v610 = vmax.f32 %v603, 0.0
  %v611 = vmax.f32 %v604, 0.0
  %v612 = vmax.f32 %v605, 0.0
  %v613 = vmax.f32 %v606, 0.0
  %v614 = vmax.f32 %v607, 0.0
  %v615 = vmax.f32 %v608, 0.0
  %v616 = vmax.f32 %v609, 0.0
  %v617 = vpack.c.bf16 %v611, %v610
  %v618 = vpack.c.bf16 %v613, %v612
  %v619 = vpack.c.bf16 %v615, %v614
  %v620 = vpack.c.bf16 %v616, %v616
  %v625 = vunpack.c.l.b16 %v617
  %v626 = vunpack.c.h.b16 %v617
  %v627 = vunpack.c.l.b16 %v618
  %v628 = vunpack.c.h.b16 %v618
  %v629 = vunpack.c.l.b16 %v619
  %v630 = vunpack.c.h.b16 %v619
  %v631 = vunpack.c.l.b16 %v620
  %v632 = vpack.c.b16 %v625, %v625
  %v633 = vpack.c.b16 %v626, %v626
  %v634 = vpack.c.b16 %v627, %v627
  %v635 = vpack.c.b16 %v628, %v628
  %v636 = vpack.c.b16 %v629, %v629
  %v637 = vpack.c.b16 %v630, %v630
  %v638 = vpack.c.b16 %v631, %v631
  %646 = vst [vmem:[%s3] sm:$0xf] %v632
  %647 = vst [vmem:[%s3 + $0x4] sm:$0xf] %v633
  %648 = vst [vmem:[%s3 + $0x8] sm:$0xf] %v634
  %649 = vst [vmem:[%s3 + $0xc] sm:$0xf] %v635
  %650 = vst [vmem:[%s3 + $0x10] sm:$0xf] %v636
  %651 = vst [vmem:[%s3 + $0x14] sm:$0xf] %v637
  %652 = vst [vmem:[%s3 + $0x18] sm:$0xf] %v638
  // Predicated region
  $region14: #{net_forward.4} parent=0 // pred_check
    _
  $region15: #{net_forward.4} parent=0 // pred_check_branch
    %654 = sbr.rel (0) target = $region17
  $region16: #{net_forward.4} parent=0 // pred_region
    _
  $region17: #{net_forward.4} parent=0 // pred_fallthru
    _
  // Predicated region
  $region18: #{net_forward.4} parent=0 // pred_check
    _
  $region19: #{net_forward.4} parent=0 // pred_check_branch
    %656 = sbr.rel (0) target = $region21
  $region20: #{net_forward.4} parent=0 // pred_region
    _
  $region21: #{net_forward.4} parent=0 // pred_fallthru
    _

// kernel: net_forward.5
$region0: #{net_forward.5}
  #allocation0 [shape = 'u32[]', space=smem, size = 0x4, offset = 0x4, fixed_abs, tag = 'smem constant byte address 0x4 - core index']
  #allocation1 [shape = 'u32[144,128]{1,0:T(1,128)}', space=vmem, size = 0x12000, scoped, tag = 'internal scratch']
  %s0 = inlined_call_operand.vmem [shape: bf16[8,512], index: 0, kind: input, shape index: {}]
  %s1 = inlined_call_operand.vmem [shape: bf16[512,128], index: 1, kind: input, shape index: {}]
  %s2 = inlined_call_operand.vmem [shape: f32[1,128], index: 2, kind: input, shape index: {}]
  %s3 = inlined_call_operand.vmem [shape: bf16[128,128], index: 3, kind: input, shape index: {}]
  %s4 = inlined_call_operand.vmem [shape: f32[1,128], index: 4, kind: input, shape index: {}]
  %s5 = inlined_call_operand.vmem [shape: bf16[128,128], index: 5, kind: input, shape index: {}]
  %s6 = inlined_call_operand.vmem [shape: f32[1,128], index: 6, kind: input, shape index: {}]
  %s7 = inlined_call_operand.vmem [shape: f32[8,128], index: 7, kind: output, shape index: {}]
  %s8 = sld [smem:[#allocation0]]
  $region38: #{net_forward.5} parent=0
    _
  %s10 = ssub.s32 1, %s8
  %s11 = scalar_select 0, %s10, %s8
  // Predicated region
  $region2: #{net_forward.5} parent=0 // pred_check
    _
  $region3: #{net_forward.5} parent=0 // pred_check_branch
    %13 = sbr.rel (0) target = $region5
  $region4: #{net_forward.5} parent=0 // pred_region
    _
  $region5: #{net_forward.5} parent=0 // pred_fallthru
    _
  // Predicated region
  $region6: #{net_forward.5} parent=0 // pred_check
    _
  $region7: #{net_forward.5} parent=0 // pred_check_branch
    %15 = sbr.rel (0) target = $region9
  $region8: #{net_forward.5} parent=0 // pred_region
    _
  $region9: #{net_forward.5} parent=0 // pred_fallthru
    _
  // Predicated region
  $region10: #{net_forward.5} parent=0 // pred_check
    _
  $region11: #{net_forward.5} parent=0 // pred_check_branch
    %17 = sbr.rel (0) target = $region13
  $region12: #{net_forward.5} parent=0 // pred_region
    _
  $region13: #{net_forward.5} parent=0 // pred_fallthru
    _
  // Predicated region
  $region14: #{net_forward.5} parent=0 // pred_check
    _
  $region15: #{net_forward.5} parent=0 // pred_check_branch
    %19 = sbr.rel (0) target = $region17
  $region16: #{net_forward.5} parent=0 // pred_region
    _
  $region17: #{net_forward.5} parent=0 // pred_fallthru
    _
  // Predicated region
  $region18: #{net_forward.5} parent=0 // pred_check
    _
  $region19: #{net_forward.5} parent=0 // pred_check_branch
    %21 = sbr.rel (0) target = $region21
  $region20: #{net_forward.5} parent=0 // pred_region
    _
  $region21: #{net_forward.5} parent=0 // pred_fallthru
    _
  // Predicated region
  $region22: #{net_forward.5} parent=0 // pred_check
    _
  $region23: #{net_forward.5} parent=0 // pred_check_branch
    %23 = sbr.rel (0) target = $region25
  $region24: #{net_forward.5} parent=0 // pred_region
    _
  $region25: #{net_forward.5} parent=0 // pred_fallthru
    _
  // Predicated region
  $region26: #{net_forward.5} parent=0 // pred_check
    _
  $region27: #{net_forward.5} parent=0 // pred_check_branch
    %25 = sbr.rel (0) target = $region29
  $region28: #{net_forward.5} parent=0 // pred_region
    _
  $region29: #{net_forward.5} parent=0 // pred_fallthru
    _
  %v27 = vld [vmem:[%s0] sm:$0xff]
  %v28 = vld [vmem:[%s0 + $0x8] sm:$0xff]
  %v29 = vld [vmem:[%s1] sm:$0xf]
  %v30 = vld [vmem:[%s1 + $0x4] sm:$0xf]
  %v31 = vld [vmem:[%s1 + $0x8] sm:$0xf]
  %v32 = vld [vmem:[%s1 + $0xc] sm:$0xf]
  %v33 = vld [vmem:[%s1 + $0x10] sm:$0xf]
  %v34 = vld [vmem:[%s1 + $0x14] sm:$0xf]
  %v35 = vld [vmem:[%s1 + $0x18] sm:$0xf]
  %v36 = vld [vmem:[%s1 + $0x1c] sm:$0xf]
  %v37 = vld [vmem:[%s1 + $0x20] sm:$0xf]
  %v38 = vld [vmem:[%s1 + $0x24] sm:$0xf]
  %v39 = vld [vmem:[%s1 + $0x28] sm:$0xf]
  %v40 = vld [vmem:[%s1 + $0x2c] sm:$0xf]
  %v41 = vld [vmem:[%s1 + $0x30] sm:$0xf]
  %v42 = vld [vmem:[%s1 + $0x34] sm:$0xf]
  %v43 = vld [vmem:[%s1 + $0x38] sm:$0xf]
  %v44 = vld [vmem:[%s1 + $0x3c] sm:$0xf]
  %v45 = vld [vmem:[%s1 + $0x40] sm:$0xf]
  %v46 = vld [vmem:[%s1 + $0x44] sm:$0xf]
  %v47 = vld [vmem:[%s1 + $0x48] sm:$0xf]
  %v48 = vld [vmem:[%s1 + $0x4c] sm:$0xf]
  %v49 = vld [vmem:[%s1 + $0x50] sm:$0xf]
  %v50 = vld [vmem:[%s1 + $0x54] sm:$0xf]
  %v51 = vld [vmem:[%s1 + $0x58] sm:$0xf]
  %v52 = vld [vmem:[%s1 + $0x5c] sm:$0xf]
  %v53 = vld [vmem:[%s1 + $0x60] sm:$0xf]
  %v54 = vld [vmem:[%s1 + $0x64] sm:$0xf]
  %v55 = vld [vmem:[%s1 + $0x68] sm:$0xf]
  %v56 = vld [vmem:[%s1 + $0x6c] sm:$0xf]
  %v57 = vld [vmem:[%s1 + $0x70] sm:$0xf]
  %v58 = vld [vmem:[%s1 + $0x74] sm:$0xf]
  %v59 = vld [vmem:[%s1 + $0x78] sm:$0xf]
  %v60 = vld [vmem:[%s1 + $0x7c] sm:$0xf]
  %v61 = vld [vmem:[%s1 + $0x80] sm:$0xf]
  %v62 = vld [vmem:[%s1 + $0x84] sm:$0xf]
  %v63 = vld [vmem:[%s1 + $0x88] sm:$0xf]
  %v64 = vld [vmem:[%s1 + $0x8c] sm:$0xf]
  %v65 = vld [vmem:[%s1 + $0x90] sm:$0xf]
  %v66 = vld [vmem:[%s1 + $0x94] sm:$0xf]
  %v67 = vld [vmem:[%s1 + $0x98] sm:$0xf]
  %v68 = vld [vmem:[%s1 + $0x9c] sm:$0xf]
  %v69 = vld [vmem:[%s1 + $0xa0] sm:$0xf]
  %v70 = vld [vmem:[%s1 + $0xa4] sm:$0xf]
  %v71 = vld [vmem:[%s1 + $0xa8] sm:$0xf]
  %v72 = vld [vmem:[%s1 + $0xac] sm:$0xf]
  %v73 = vld [vmem:[%s1 + $0xb0] sm:$0xf]
  %v74 = vld [vmem:[%s1 + $0xb4] sm:$0xf]
  %v75 = vld [vmem:[%s1 + $0xb8] sm:$0xf]
  %v76 = vld [vmem:[%s1 + $0xbc] sm:$0xf]
  %v77 = vld [vmem:[%s1 + $0xc0] sm:$0xf]
  %v78 = vld [vmem:[%s1 + $0xc4] sm:$0xf]
  %v79 = vld [vmem:[%s1 + $0xc8] sm:$0xf]
  %v80 = vld [vmem:[%s1 + $0xcc] sm:$0xf]
  %v81 = vld [vmem:[%s1 + $0xd0] sm:$0xf]
  %v82 = vld [vmem:[%s1 + $0xd4] sm:$0xf]
  %v83 = vld [vmem:[%s1 + $0xd8] sm:$0xf]
  %v84 = vld [vmem:[%s1 + $0xdc] sm:$0xf]
  %v85 = vld [vmem:[%s1 + $0xe0] sm:$0xf]
  %v86 = vld [vmem:[%s1 + $0xe4] sm:$0xf]
  %v87 = vld [vmem:[%s1 + $0xe8] sm:$0xf]
  %v88 = vld [vmem:[%s1 + $0xec] sm:$0xf]
  %v89 = vld [vmem:[%s1 + $0xf0] sm:$0xf]
  %v90 = vld [vmem:[%s1 + $0xf4] sm:$0xf]
  %v91 = vld [vmem:[%s1 + $0xf8] sm:$0xf]
  %v92 = vld [vmem:[%s1 + $0xfc] sm:$0xf]
  %v93 = vld [vmem:[%s2] sm:$0x1]
  %v95 = vlaneseq
  %v96 = vshrl.u32 %v95, 7
  %v97 = vsub.s32 0, %v96
  %v98 = vrot.slane %v93, %v97
  %v102 = vunpack.c.l.b16 %v27
  %v103 = vunpack.c.h.b16 %v27
  %v104 = vunpack.c.l.b16 %v28
  %v105 = vunpack.c.h.b16 %v28
  %v106 = vpack.c.b16 %v102, %v102
  %v107 = vpack.c.b16 %v103, %v103
  %v108 = vpack.c.b16 %v104, %v104
  %v109 = vpack.c.b16 %v105, %v105
  %v178 = vunpack.c.l.b16 %v29
  %v179 = vunpack.c.l.b16 %v30
  %v180 = vunpack.c.l.b16 %v31
  %v181 = vunpack.c.l.b16 %v32
  %v182 = vunpack.c.l.b16 %v33
  %v183 = vunpack.c.l.b16 %v34
  %v184 = vunpack.c.l.b16 %v35
  %v185 = vunpack.c.l.b16 %v36
  %v186 = vunpack.c.l.b16 %v37
  %v187 = vunpack.c.l.b16 %v38
  %v188 = vunpack.c.l.b16 %v39
  %v189 = vunpack.c.l.b16 %v40
  %v190 = vunpack.c.l.b16 %v41
  %v191 = vunpack.c.l.b16 %v42
  %v192 = vunpack.c.l.b16 %v43
  %v193 = vunpack.c.l.b16 %v44
  %v194 = vunpack.c.l.b16 %v45
  %v195 = vunpack.c.l.b16 %v46
  %v196 = vunpack.c.l.b16 %v47
  %v197 = vunpack.c.l.b16 %v48
  %v198 = vunpack.c.l.b16 %v49
  %v199 = vunpack.c.l.b16 %v50
  %v200 = vunpack.c.l.b16 %v51
  %v201 = vunpack.c.l.b16 %v52
  %v202 = vunpack.c.l.b16 %v53
  %v203 = vunpack.c.l.b16 %v54
  %v204 = vunpack.c.l.b16 %v55
  %v205 = vunpack.c.l.b16 %v56
  %v206 = vunpack.c.l.b16 %v57
  %v207 = vunpack.c.l.b16 %v58
  %v208 = vunpack.c.l.b16 %v59
  %v209 = vunpack.c.l.b16 %v60
  %v210 = vunpack.c.l.b16 %v61
  %v211 = vunpack.c.l.b16 %v62
  %v212 = vunpack.c.l.b16 %v63
  %v213 = vunpack.c.l.b16 %v64
  %v214 = vunpack.c.l.b16 %v65
  %v215 = vunpack.c.l.b16 %v66
  %v216 = vunpack.c.l.b16 %v67
  %v217 = vunpack.c.l.b16 %v68
  %v218 = vunpack.c.l.b16 %v69
  %v219 = vunpack.c.l.b16 %v70
  %v220 = vunpack.c.l.b16 %v71
  %v221 = vunpack.c.l.b16 %v72
  %v222 = vunpack.c.l.b16 %v73
  %v223 = vunpack.c.l.b16 %v74
  %v224 = vunpack.c.l.b16 %v75
  %v225 = vunpack.c.l.b16 %v76
  %v226 = vunpack.c.l.b16 %v77
  %v227 = vunpack.c.l.b16 %v78
  %v228 = vunpack.c.l.b16 %v79
  %v229 = vunpack.c.l.b16 %v80
  %v230 = vunpack.c.l.b16 %v81
  %v231 = vunpack.c.l.b16 %v82
  %v232 = vunpack.c.l.b16 %v83
  %v233 = vunpack.c.l.b16 %v84
  %v234 = vunpack.c.l.b16 %v85
  %v235 = vunpack.c.l.b16 %v86
  %v236 = vunpack.c.l.b16 %v87
  %v237 = vunpack.c.l.b16 %v88
  %v238 = vunpack.c.l.b16 %v89
  %v239 = vunpack.c.l.b16 %v90
  %v240 = vunpack.c.l.b16 %v91
  %v241 = vunpack.c.l.b16 %v92
  %v242 = vpack.c.b16 %v179, %v178
  %v243 = vpack.c.b16 %v181, %v180
  %v244 = vpack.c.b16 %v183, %v182
  %v245 = vpack.c.b16 %v185, %v184
  %v246 = vpack.c.b16 %v187, %v186
  %v247 = vpack.c.b16 %v189, %v188
  %v248 = vpack.c.b16 %v191, %v190
  %v249 = vpack.c.b16 %v193, %v192
  %v250 = vpack.c.b16 %v195, %v194
  %v251 = vpack.c.b16 %v197, %v196
  %v252 = vpack.c.b16 %v199, %v198
  %v253 = vpack.c.b16 %v201, %v200
  %v254 = vpack.c.b16 %v203, %v202
  %v255 = vpack.c.b16 %v205, %v204
  %v256 = vpack.c.b16 %v207, %v206
  %v257 = vpack.c.b16 %v209, %v208
  %v258 = vpack.c.b16 %v211, %v210
  %v259 = vpack.c.b16 %v213, %v212
  %v260 = vpack.c.b16 %v215, %v214
  %v261 = vpack.c.b16 %v217, %v216
  %v262 = vpack.c.b16 %v219, %v218
  %v263 = vpack.c.b16 %v221, %v220
  %v264 = vpack.c.b16 %v223, %v222
  %v265 = vpack.c.b16 %v225, %v224
  %v266 = vpack.c.b16 %v227, %v226
  %v267 = vpack.c.b16 %v229, %v228
  %v268 = vpack.c.b16 %v231, %v230
  %v269 = vpack.c.b16 %v233, %v232
  %v270 = vpack.c.b16 %v235, %v234
  %v271 = vpack.c.b16 %v237, %v236
  %v272 = vpack.c.b16 %v239, %v238
  %v273 = vpack.c.b16 %v241, %v240
  %306 = vmatprep.subr.bf16.mxu0 0
  %307 = vmatpush1.bf16.msra.mxu0 %v242
  %308 = vmatprep.subr.bf16.mxu0 0
  %309 = vmatpush1.bf16.msra.mxu0 %v243
  %310 = vmatprep.subr.bf16.mxu0 0
  %311 = vmatpush1.bf16.msra.mxu0 %v244
  %312 = vmatprep.subr.bf16.mxu0 0
  %313 = vmatpush1.bf16.msra.mxu0 %v245
  %314 = vmatprep.subr.bf16.mxu0 0
  %315 = vmatpush1.bf16.msra.mxu0 %v246
  %316 = vmatprep.subr.bf16.mxu0 0
  %317 = vmatpush1.bf16.msra.mxu0 %v247
  %318 = vmatprep.subr.bf16.mxu0 0
  %319 = vmatpush1.bf16.msra.mxu0 %v248
  %320 = vmatprep.subr.bf16.mxu0 0
  %321 = vmatpush1.bf16.msra.mxu0 %v249
  %322 = vmatprep.subr.bf16.mxu0 0
  %323 = vmatpush1.bf16.msra.mxu0 %v250
  %324 = vmatprep.subr.bf16.mxu0 0
  %325 = vmatpush1.bf16.msra.mxu0 %v251
  %326 = vmatprep.subr.bf16.mxu0 0
  %327 = vmatpush1.bf16.msra.mxu0 %v252
  %328 = vmatprep.subr.bf16.mxu0 0
  %329 = vmatpush1.bf16.msra.mxu0 %v253
  %330 = vmatprep.subr.bf16.mxu0 0
  %331 = vmatpush1.bf16.msra.mxu0 %v254
  %332 = vmatprep.subr.bf16.mxu0 0
  %333 = vmatpush1.bf16.msra.mxu0 %v255
  %334 = vmatprep.subr.bf16.mxu0 0
  %335 = vmatpush1.bf16.msra.mxu0 %v256
  %336 = vmatprep.subr.bf16.mxu0 0
  %337 = vmatpush1.bf16.msra.mxu0 %v257
  %338 = vmatprep.mubr.bf16.mxu0 %v107
  %339 = vmatmul.mubr.bf16.gmra.mrb[0].mxu0 %v106
  %v340 = vpop.f32.mrb[0].mxu0
  %v341 = vadd.f32 %v98, %v340
  %v342 = vpop.f32.mrb[0].mxu0
  %v343 = vpop.f32.mrb[0].mxu0
  %v344 = vpop.f32.mrb[0].mxu0
  %345 = vdwg.mxu0
  %346 = vmatprep.subr.bf16.mxu0 0
  %347 = vmatpush1.bf16.msra.mxu0 %v258
  %348 = vmatprep.subr.bf16.mxu0 0
  %349 = vmatpush1.bf16.msra.mxu0 %v259
  %350 = vmatprep.subr.bf16.mxu0 0
  %351 = vmatpush1.bf16.msra.mxu0 %v260
  %352 = vmatprep.subr.bf16.mxu0 0
  %353 = vmatpush1.bf16.msra.mxu0 %v261
  %354 = vmatprep.subr.bf16.mxu0 0
  %355 = vmatpush1.bf16.msra.mxu0 %v262
  %356 = vmatprep.subr.bf16.mxu0 0
  %357 = vmatpush1.bf16.msra.mxu0 %v263
  %358 = vmatprep.subr.bf16.mxu0 0
  %359 = vmatpush1.bf16.msra.mxu0 %v264
  %360 = vmatprep.subr.bf16.mxu0 0
  %361 = vmatpush1.bf16.msra.mxu0 %v265
  %362 = vmatprep.subr.bf16.mxu0 0
  %363 = vmatpush1.bf16.msra.mxu0 %v266
  %364 = vmatprep.subr.bf16.mxu0 0
  %365 = vmatpush1.bf16.msra.mxu0 %v267
  %366 = vmatprep.subr.bf16.mxu0 0
  %367 = vmatpush1.bf16.msra.mxu0 %v268
  %368 = vmatprep.subr.bf16.mxu0 0
  %369 = vmatpush1.bf16.msra.mxu0 %v269
  %370 = vmatprep.subr.bf16.mxu0 0
  %371 = vmatpush1.bf16.msra.mxu0 %v270
  %372 = vmatprep.subr.bf16.mxu0 0
  %373 = vmatpush1.bf16.msra.mxu0 %v271
  %374 = vmatprep.subr.bf16.mxu0 0
  %375 = vmatpush1.bf16.msra.mxu0 %v272
  %376 = vmatprep.subr.bf16.mxu0 0
  %377 = vmatpush1.bf16.msra.mxu0 %v273
  %378 = vmatprep.mubr.bf16.mxu0 %v109
  %379 = vmatmul.mubr.bf16.gmra.mrb[0].mxu0 %v108
  %v380 = vpop.f32.mrb[0].mxu0
  %v381 = vadd.f32 %v341, %v380
  %v382 = vpop.f32.mrb[0].mxu0
  %v383 = vpop.f32.mrb[0].mxu0
  %v384 = vpop.f32.mrb[0].mxu0
  %385 = vdwg.mxu0
  %v386 = vmax.f32 %v381, 0.0
  %v387 = vpack.c.bf16 %v386, %v386
  %v388 = vld [vmem:[%s3] sm:$0xf]
  %v389 = vld [vmem:[%s3 + $0x4] sm:$0xf]
  %v390 = vld [vmem:[%s3 + $0x8] sm:$0xf]
  %v391 = vld [vmem:[%s3 + $0xc] sm:$0xf]
  %v392 = vld [vmem:[%s3 + $0x10] sm:$0xf]
  %v393 = vld [vmem:[%s3 + $0x14] sm:$0xf]
  %v394 = vld [vmem:[%s3 + $0x18] sm:$0xf]
  %v395 = vld [vmem:[%s3 + $0x1c] sm:$0xf]
  %v396 = vld [vmem:[%s3 + $0x20] sm:$0xf]
  %v397 = vld [vmem:[%s3 + $0x24] sm:$0xf]
  %v398 = vld [vmem:[%s3 + $0x28] sm:$0xf]
  %v399 = vld [vmem:[%s3 + $0x2c] sm:$0xf]
  %v400 = vld [vmem:[%s3 + $0x30] sm:$0xf]
  %v401 = vld [vmem:[%s3 + $0x34] sm:$0xf]
  %v402 = vld [vmem:[%s3 + $0x38] sm:$0xf]
  %v403 = vld [vmem:[%s3 + $0x3c] sm:$0xf]
  %v404 = vld [vmem:[%s4] sm:$0x1]
  %v406 = vlaneseq
  %v407 = vshrl.u32 %v406, 7
  %v408 = vsub.s32 0, %v407
  %v409 = vrot.slane %v404, %v408
  %v427 = vunpack.c.l.b16 %v388
  %v428 = vunpack.c.l.b16 %v389
  %v429 = vunpack.c.l.b16 %v390
  %v430 = vunpack.c.l.b16 %v391
  %v431 = vunpack.c.l.b16 %v392
  %v432 = vunpack.c.l.b16 %v393
  %v433 = vunpack.c.l.b16 %v394
  %v434 = vunpack.c.l.b16 %v395
  %v435 = vunpack.c.l.b16 %v396
  %v436 = vunpack.c.l.b16 %v397
  %v437 = vunpack.c.l.b16 %v398
  %v438 = vunpack.c.l.b16 %v399
  %v439 = vunpack.c.l.b16 %v400
  %v440 = vunpack.c.l.b16 %v401
  %v441 = vunpack.c.l.b16 %v402
  %v442 = vunpack.c.l.b16 %v403
  %v443 = vpack.c.b16 %v428, %v427
  %v444 = vpack.c.b16 %v430, %v429
  %v445 = vpack.c.b16 %v432, %v431
  %v446 = vpack.c.b16 %v434, %v433
  %v447 = vpack.c.b16 %v436, %v435
  %v448 = vpack.c.b16 %v438, %v437
  %v449 = vpack.c.b16 %v440, %v439
  %v450 = vpack.c.b16 %v442, %v441
  %459 = vmatprep.subr.bf16.mxu0 0
  %460 = vmatpush1.bf16.msra.mxu0 %v443
  %461 = vmatprep.subr.bf16.mxu0 0
  %462 = vmatpush1.bf16.msra.mxu0 %v444
  %463 = vmatprep.subr.bf16.mxu0 0
  %464 = vmatpush1.bf16.msra.mxu0 %v445
  %465 = vmatprep.subr.bf16.mxu0 0
  %466 = vmatpush1.bf16.msra.mxu0 %v446
  %467 = vmatprep.subr.bf16.mxu0 0
  %468 = vmatpush1.bf16.msra.mxu0 %v447
  %469 = vmatprep.subr.bf16.mxu0 0
  %470 = vmatpush1.bf16.msra.mxu0 %v448
  %471 = vmatprep.subr.bf16.mxu0 0
  %472 = vmatpush1.bf16.msra.mxu0 %v449
  %473 = vmatprep.subr.bf16.mxu0 0
  %474 = vmatpush1.bf16.msra.mxu0 %v450
  %475 = vmatprep.subr.bf16.mxu0 0
  %476 = vmatpush1.bf16.msra.mxu0 0
  %477 = vmatprep.subr.bf16.mxu0 0
  %478 = vmatpush1.bf16.msra.mxu0 0
  %479 = vmatprep.subr.bf16.mxu0 0
  %480 = vmatpush1.bf16.msra.mxu0 0
  %481 = vmatprep.subr.bf16.mxu0 0
  %482 = vmatpush1.bf16.msra.mxu0 0
  %483 = vmatprep.subr.bf16.mxu0 0
  %484 = vmatpush1.bf16.msra.mxu0 0
  %485 = vmatprep.subr.bf16.mxu0 0
  %486 = vmatpush1.bf16.msra.mxu0 0
  %487 = vmatprep.subr.bf16.mxu0 0
  %488 = vmatpush1.bf16.msra.mxu0 0
  %489 = vmatprep.subr.bf16.mxu0 0
  %490 = vmatpush1.bf16.msra.mxu0 0
  %491 = vmatprep.mubr.bf16.mxu0 0
  %492 = vmatmul.mubr.bf16.gmra.mrb[0].mxu0 %v387
  %v493 = vpop.f32.mrb[0].mxu0
  %v494 = vadd.f32 %v409, %v493
  %v495 = vpop.f32.mrb[0].mxu0
  %v496 = vpop.f32.mrb[0].mxu0
  %v497 = vpop.f32.mrb[0].mxu0
  %498 = vdwg.mxu0
  %v499 = vmax.f32 %v494, 0.0
  %v500 = vpack.c.bf16 %v499, %v499
  %v501 = vld [vmem:[%s5] sm:$0xf]
  %v502 = vld [vmem:[%s5 + $0x4] sm:$0xf]
  %v503 = vld [vmem:[%s5 + $0x8] sm:$0xf]
  %v504 = vld [vmem:[%s5 + $0xc] sm:$0xf]
  %v505 = vld [vmem:[%s5 + $0x10] sm:$0xf]
  %v506 = vld [vmem:[%s5 + $0x14] sm:$0xf]
  %v507 = vld [vmem:[%s5 + $0x18] sm:$0xf]
  %v508 = vld [vmem:[%s5 + $0x1c] sm:$0xf]
  %v509 = vld [vmem:[%s5 + $0x20] sm:$0xf]
  %v510 = vld [vmem:[%s5 + $0x24] sm:$0xf]
  %v511 = vld [vmem:[%s5 + $0x28] sm:$0xf]
  %v512 = vld [vmem:[%s5 + $0x2c] sm:$0xf]
  %v513 = vld [vmem:[%s5 + $0x30] sm:$0xf]
  %v514 = vld [vmem:[%s5 + $0x34] sm:$0xf]
  %v515 = vld [vmem:[%s5 + $0x38] sm:$0xf]
  %v516 = vld [vmem:[%s5 + $0x3c] sm:$0xf]
  %v517 = vld [vmem:[%s6] sm:$0x1]
  %v519 = vlaneseq
  %v520 = vshrl.u32 %v519, 7
  %v521 = vsub.s32 0, %v520
  %v522 = vrot.slane %v517, %v521
  %v540 = vunpack.c.l.b16 %v501
  %v541 = vunpack.c.l.b16 %v502
  %v542 = vunpack.c.l.b16 %v503
  %v543 = vunpack.c.l.b16 %v504
  %v544 = vunpack.c.l.b16 %v505
  %v545 = vunpack.c.l.b16 %v506
  %v546 = vunpack.c.l.b16 %v507
  %v547 = vunpack.c.l.b16 %v508
  %v548 = vunpack.c.l.b16 %v509
  %v549 = vunpack.c.l.b16 %v510
  %v550 = vunpack.c.l.b16 %v511
  %v551 = vunpack.c.l.b16 %v512
  %v552 = vunpack.c.l.b16 %v513
  %v553 = vunpack.c.l.b16 %v514
  %v554 = vunpack.c.l.b16 %v515
  %v555 = vunpack.c.l.b16 %v516
  %v556 = vpack.c.b16 %v541, %v540
  %v557 = vpack.c.b16 %v543, %v542
  %v558 = vpack.c.b16 %v545, %v544
  %v559 = vpack.c.b16 %v547, %v546
  %v560 = vpack.c.b16 %v549, %v548
  %v561 = vpack.c.b16 %v551, %v550
  %v562 = vpack.c.b16 %v553, %v552
  %v563 = vpack.c.b16 %v555, %v554
  %572 = vmatprep.subr.bf16.mxu0 0
  %573 = vmatpush1.bf16.msra.mxu0 %v556
  %574 = vmatprep.subr.bf16.mxu0 0
  %575 = vmatpush1.bf16.msra.mxu0 %v557
  %576 = vmatprep.subr.bf16.mxu0 0
  %577 = vmatpush1.bf16.msra.mxu0 %v558
  %578 = vmatprep.subr.bf16.mxu0 0
  %579 = vmatpush1.bf16.msra.mxu0 %v559
  %580 = vmatprep.subr.bf16.mxu0 0
  %581 = vmatpush1.bf16.msra.mxu0 %v560
  %582 = vmatprep.subr.bf16.mxu0 0
  %583 = vmatpush1.bf16.msra.mxu0 %v561
  %584 = vmatprep.subr.bf16.mxu0 0
  %585 = vmatpush1.bf16.msra.mxu0 %v562
  %586 = vmatprep.subr.bf16.mxu0 0
  %587 = vmatpush1.bf16.msra.mxu0 %v563
  %588 = vmatprep.subr.bf16.mxu0 0
  %589 = vmatpush1.bf16.msra.mxu0 0
  %590 = vmatprep.subr.bf16.mxu0 0
  %591 = vmatpush1.bf16.msra.mxu0 0
  %592 = vmatprep.subr.bf16.mxu0 0
  %593 = vmatpush1.bf16.msra.mxu0 0
  %594 = vmatprep.subr.bf16.mxu0 0
  %595 = vmatpush1.bf16.msra.mxu0 0
  %596 = vmatprep.subr.bf16.mxu0 0
  %597 = vmatpush1.bf16.msra.mxu0 0
  %598 = vmatprep.subr.bf16.mxu0 0
  %599 = vmatpush1.bf16.msra.mxu0 0
  %600 = vmatprep.subr.bf16.mxu0 0
  %601 = vmatpush1.bf16.msra.mxu0 0
  %602 = vmatprep.subr.bf16.mxu0 0
  %603 = vmatpush1.bf16.msra.mxu0 0
  %604 = vmatprep.mubr.bf16.mxu0 0
  %605 = vmatmul.mubr.bf16.gmra.mrb[0].mxu0 %v500
  %v606 = vpop.f32.mrb[0].mxu0
  %v607 = vadd.f32 %v522, %v606
  %v608 = vpop.f32.mrb[0].mxu0
  %v609 = vpop.f32.mrb[0].mxu0
  %v610 = vpop.f32.mrb[0].mxu0
  %611 = vdwg.mxu0
  %612 = vst [vmem:[%s7] sm:$0xff] %v607
  // Predicated region
  $region30: #{net_forward.5} parent=0 // pred_check
    _
  $region31: #{net_forward.5} parent=0 // pred_check_branch
    %614 = sbr.rel (0) target = $region33
  $region32: #{net_forward.5} parent=0 // pred_region
    _
  $region33: #{net_forward.5} parent=0 // pred_fallthru
    _
  // Predicated region
  $region34: #{net_forward.5} parent=0 // pred_check
    _
  $region35: #{net_forward.5} parent=0 // pred_check_branch
    %616 = sbr.rel (0) target = $region37
  $region36: #{net_forward.5} parent=0 // pred_region
    _
  $region37: #{net_forward.5} parent=0 // pred_fallthru
    _

</llo_original>
